<compile_context>
chip_gen: v6e
topology: v6e:2x2x1
jax: 0.10.0
libtpu: 0.0.40
codegen_flags: <defaults>
</compile_context>

<pallas_src>
import functools

import numpy as np
import jax
import jax.numpy as jnp
from jax.experimental import pallas as pl
from jax.experimental.pallas import tpu as pltpu

text = 'hello world, this is a simple text generation using LSTMs.'
chars = sorted(set(text))
VOCAB = len(chars)
EMBED = 16
HIDDEN = 128


def _round_up(x, m):
    return ((x + m - 1) // m) * m


def lstm_kernel(tok_ref, table_ref, whh_ref, wfc_ref, bfc_ref, out_ref,
                gx_ref, *, B, T):
    """Whole TextLSTM forward in VMEM.

    tok_ref:   (B*T,)        int32 SMEM   flattened tokens (scalar prefetch)
    table_ref: (V, 1, 4H)    f32   VMEM   per-token gate pre-activations
                                          (emb @ W_ih + b, i/f/o cols * 0.5)
    whh_ref:   (H, 4H)       f32   VMEM   recurrent weights (i/f/o cols * 0.5)
    wfc_ref:   (H, Vp)       f32   VMEM   fc weight, lane-padded
    bfc_ref:   (1, Vp)       f32   VMEM   fc bias, lane-padded
    out_ref:   (Bp, Vp)      f32   VMEM   logits (wrapper slices to (B, V))
    gx_ref:    (T, Bp, 4H)   f32   VMEM   scratch: gathered gate inputs
    """
    H = whh_ref.shape[0]
    Bp = gx_ref.shape[1]

    # ---- In-kernel embedding/input-projection gather (off the serial chain).
    gx_ref[...] = jnp.zeros_like(gx_ref)          # padded rows -> zero gates
    for t in range(T):
        for b in range(B):
            idx = tok_ref[b * T + t]              # scalar read from SMEM
            gx_ref[t, pl.ds(b, 1), :] = table_ref[idx]   # (1, 4H) row copy

    # ---- LSTM recurrence (hidden-state path only), fully unrolled.
    h = jnp.zeros((Bp, H), jnp.float32)
    c = jnp.zeros((Bp, H), jnp.float32)
    for t in range(T):
        gates = gx_ref[t] + jnp.dot(h, whh_ref[...],
                                    preferred_element_type=jnp.float32)
        # One 4H-wide tanh (single EUP push); i/f/o were pre-scaled by 0.5 so
        # sigmoid(z) == 0.5*tanh(z/2) + 0.5, and g is the tanh slice directly.
        tg = jnp.tanh(gates)
        i_g = 0.5 * tg[:, 0:H] + 0.5
        f_g = 0.5 * tg[:, H:2 * H] + 0.5
        g_g = tg[:, 2 * H:3 * H]
        o_g = 0.5 * tg[:, 3 * H:4 * H] + 0.5
        c = f_g * c + i_g * g_g
        h = o_g * jnp.tanh(c)

    # ---- Final linear layer on the last hidden state (lane-dense store).
    out_ref[...] = (jnp.dot(h, wfc_ref[...], preferred_element_type=jnp.float32)
                    + bfc_ref[...])


def prepare_params(params):
    """One-time, token-independent folding of weights for the kernel."""
    H = HIDDEN
    hp = jax.lax.Precision.HIGHEST
    Vp = _round_up(max(VOCAB, 128), 128)
    # Per-gate scale: sigmoid gates (i, f, o) pre-scaled by 0.5, g unscaled.
    scale = jnp.concatenate(
        [jnp.full((1, H), 0.5, jnp.float32),
         jnp.full((1, H), 0.5, jnp.float32),
         jnp.ones((1, H), jnp.float32),
         jnp.full((1, H), 0.5, jnp.float32)], axis=1)
    table = (jnp.dot(params["embedding"], params["w_ih"], precision=hp)
             + params["b"]) * scale                        # (V, 4H)
    table = table.reshape(VOCAB, 1, 4 * H)                  # leading-axis gather
    return {
        "table": table,
        "whh": params["w_hh"] * scale,
        "wfc": jnp.pad(params["w_fc"], ((0, 0), (0, Vp - VOCAB))),
        "bfc": jnp.pad(params["b_fc"], ((0, 0), (0, Vp - VOCAB))),
    }


@jax.jit
def text_lstm_forward(tokens, prep):
    B, T = tokens.shape
    H = HIDDEN
    Bp = _round_up(max(B, 8), 8)          # f32 sublane minimum
    Vp = prep["wfc"].shape[1]             # lane-dense output width

    tok_flat = tokens.reshape(-1).astype(jnp.int32)
    kernel = functools.partial(lstm_kernel, B=B, T=T)

    out_padded = pl.pallas_call(
        kernel,
        out_shape=jax.ShapeDtypeStruct((Bp, Vp), jnp.float32),
        grid_spec=pltpu.PrefetchScalarGridSpec(
            num_scalar_prefetch=1,
            grid=(1,),
            in_specs=[pl.BlockSpec(memory_space=pltpu.MemorySpace.VMEM)] * 4,
            out_specs=pl.BlockSpec(memory_space=pltpu.MemorySpace.VMEM),
            scratch_shapes=[pltpu.VMEM((T, Bp, 4 * H), jnp.float32)],
        ),
    )(tok_flat, prep["table"], prep["whh"], prep["wfc"], prep["bfc"])

    return out_padded[:B, :VOCAB]


def init_params(key):
    ks = jax.random.split(key, 7)
    s = 1.0 / np.sqrt(HIDDEN)
    return {
        "embedding": jax.random.normal(ks[0], (VOCAB, EMBED), jnp.float32),
        "w_ih": jax.random.uniform(ks[1], (EMBED, 4 * HIDDEN), jnp.float32, -s, s),
        "w_hh": jax.random.uniform(ks[2], (HIDDEN, 4 * HIDDEN), jnp.float32, -s, s),
        # PyTorch has separate b_ih and b_hh; they only ever appear summed.
        "b": (jax.random.uniform(ks[3], (1, 4 * HIDDEN), jnp.float32, -s, s)
              + jax.random.uniform(ks[4], (1, 4 * HIDDEN), jnp.float32, -s, s)),
        "w_fc": jax.random.uniform(ks[5], (HIDDEN, VOCAB), jnp.float32, -s, s),
        "b_fc": jax.random.uniform(ks[6], (1, VOCAB), jnp.float32, -s, s),
    }


def reference_forward(tokens, params):
    """Pure-JAX reference of the same forward pass (matches the PyTorch module)."""
    hp = jax.lax.Precision.HIGHEST
    emb = jnp.take(params["embedding"], tokens, axis=0)  # (B, T, E)
    B, T, _ = emb.shape
    H = HIDDEN
    h = jnp.zeros((B, H), jnp.float32)
    c = jnp.zeros((B, H), jnp.float32)
    for t in range(T):
        gates = (jnp.dot(emb[:, t, :], params["w_ih"], precision=hp)
                 + jnp.dot(h, params["w_hh"], precision=hp) + params["b"])
        i_g = jax.nn.sigmoid(gates[:, 0:H])
        f_g = jax.nn.sigmoid(gates[:, H:2 * H])
        g_g = jnp.tanh(gates[:, 2 * H:3 * H])
        o_g = jax.nn.sigmoid(gates[:, 3 * H:4 * H])
        c = f_g * c + i_g * g_g
        h = o_g * jnp.tanh(c)
    return jnp.dot(h, params["w_fc"], precision=hp) + params["b_fc"]


if __name__ == "__main__":
    key = jax.random.PRNGKey(0)
    pkey, xkey = jax.random.split(key)
    params = init_params(pkey)
    prep = prepare_params(params)   # one-time weight folding (outside jit loop)

    B, T = 2, 8
    tokens = jax.random.randint(xkey, (B, T), 0, VOCAB, dtype=jnp.int32)

    logits = text_lstm_forward(tokens, prep)
    logits = jax.block_until_ready(logits)

    ref = reference_forward(tokens, params)
    np.testing.assert_allclose(np.asarray(logits), np.asarray(ref),
                               rtol=1e-3, atol=1e-3)
    assert logits.shape == (B, VOCAB)
    print("KERNEL_OK")
</pallas_src>

<mosaic_0001>
module attributes {stable_mosaic.version = 11 : i64} {
  func.func @lstm_kernel(%arg0: i32, %arg1: memref<16xi32, #tpu.memory_space<smem>>, %arg2: memref<24x1x512xf32, #tpu.memory_space<vmem>>, %arg3: memref<128x512xf32, #tpu.memory_space<vmem>>, %arg4: memref<128x128xf32, #tpu.memory_space<vmem>>, %arg5: memref<1x128xf32, #tpu.memory_space<vmem>>, %arg6: memref<8x128xf32, #tpu.memory_space<vmem>>, %arg7: memref<8x8x512xf32, #tpu.memory_space<vmem>>) attributes {dimension_semantics = [#tpu.dimension_semantics<arbitrary>], iteration_bounds = array<i64: 1>, scalar_prefetch = 1 : i64, scratch_operands = 1 : i64, tpu.core_type = #tpu.core_type<tc>, window_params = [{pipeline_mode = #tpu.pipeline_mode<synchronous>, transform_indices = @transform_0, window_bounds = array<i64: 24, 1, 512>}, {pipeline_mode = #tpu.pipeline_mode<synchronous>, transform_indices = @transform_1, window_bounds = array<i64: 128, 512>}, {pipeline_mode = #tpu.pipeline_mode<synchronous>, transform_indices = @transform_2, window_bounds = array<i64: 128, 128>}, {pipeline_mode = #tpu.pipeline_mode<synchronous>, transform_indices = @transform_3, window_bounds = array<i64: 1, 128>}, {pipeline_mode = #tpu.pipeline_mode<synchronous>, transform_indices = @transform_4, window_bounds = array<i64: 8, 128>}]} {
    %cst = arith.constant 0.000000e+00 : f32
    %0 = vector.broadcast %cst : f32 to vector<8x8x512xf32>
    %c0 = arith.constant 0 : index
    %c0_0 = arith.constant 0 : index
    %c0_1 = arith.constant 0 : index
    %1 = vector.load %arg7[%c0, %c0_0, %c0_1] : memref<8x8x512xf32, #tpu.memory_space<vmem>>, vector<8x8x512xf32>
    tpu.vector_store %arg7[%c0, %c0_0, %c0_1], %0 {strides = array<i32>} : memref<8x8x512xf32, #tpu.memory_space<vmem>>, vector<8x8x512xf32>,
    %c0_2 = arith.constant 0 : index
    %2 = memref.load %arg1[%c0_2] : memref<16xi32, #tpu.memory_space<smem>>
    %3 = arith.index_cast %2 : i32 to index
    %c0_3 = arith.constant 0 : index
    %c0_4 = arith.constant 0 : index
    %4 = vector.load %arg2[%3, %c0_3, %c0_4] : memref<24x1x512xf32, #tpu.memory_space<vmem>>, vector<1x1x512xf32>
    %5 = vector.shape_cast %4 : vector<1x1x512xf32> to vector<1x512xf32>
    %c0_5 = arith.constant 0 : index
    %c0_6 = arith.constant 0 : index
    %c0_7 = arith.constant 0 : index
    %6 = vector.load %arg7[%c0_5, %c0_6, %c0_7] : memref<8x8x512xf32, #tpu.memory_space<vmem>>, vector<1x1x512xf32>
    %7 = vector.shape_cast %6 : vector<1x1x512xf32> to vector<1x512xf32>
    %8 = vector.shape_cast %5 : vector<1x512xf32> to vector<1x1x512xf32>
    tpu.vector_store %arg7[%c0_5, %c0_6, %c0_7], %8 {strides = array<i32>} : memref<8x8x512xf32, #tpu.memory_space<vmem>>, vector<1x1x512xf32>,
    %c8 = arith.constant 8 : index
    %9 = memref.load %arg1[%c8] : memref<16xi32, #tpu.memory_space<smem>>
    %10 = arith.index_cast %9 : i32 to index
    %c0_8 = arith.constant 0 : index
    %c0_9 = arith.constant 0 : index
    %11 = vector.load %arg2[%10, %c0_8, %c0_9] : memref<24x1x512xf32, #tpu.memory_space<vmem>>, vector<1x1x512xf32>
    %12 = vector.shape_cast %11 : vector<1x1x512xf32> to vector<1x512xf32>
    %c0_10 = arith.constant 0 : index
    %c1 = arith.constant 1 : index
    %c0_11 = arith.constant 0 : index
    %13 = vector.load %arg7[%c0_10, %c1, %c0_11] : memref<8x8x512xf32, #tpu.memory_space<vmem>>, vector<1x1x512xf32>
    %14 = vector.shape_cast %13 : vector<1x1x512xf32> to vector<1x512xf32>
    %15 = vector.shape_cast %12 : vector<1x512xf32> to vector<1x1x512xf32>
    tpu.vector_store %arg7[%c0_10, %c1, %c0_11], %15 {strides = array<i32>} : memref<8x8x512xf32, #tpu.memory_space<vmem>>, vector<1x1x512xf32>,
    %c1_12 = arith.constant 1 : index
    %16 = memref.load %arg1[%c1_12] : memref<16xi32, #tpu.memory_space<smem>>
    %17 = arith.index_cast %16 : i32 to index
    %c0_13 = arith.constant 0 : index
    %c0_14 = arith.constant 0 : index
    %18 = vector.load %arg2[%17, %c0_13, %c0_14] : memref<24x1x512xf32, #tpu.memory_space<vmem>>, vector<1x1x512xf32>
    %19 = vector.shape_cast %18 : vector<1x1x512xf32> to vector<1x512xf32>
    %c1_15 = arith.constant 1 : index
    %c0_16 = arith.constant 0 : index
    %c0_17 = arith.constant 0 : index
    %20 = vector.load %arg7[%c1_15, %c0_16, %c0_17] : memref<8x8x512xf32, #tpu.memory_space<vmem>>, vector<1x1x512xf32>
    %21 = vector.shape_cast %20 : vector<1x1x512xf32> to vector<1x512xf32>
    %22 = vector.shape_cast %19 : vector<1x512xf32> to vector<1x1x512xf32>
    tpu.vector_store %arg7[%c1_15, %c0_16, %c0_17], %22 {strides = array<i32>} : memref<8x8x512xf32, #tpu.memory_space<vmem>>, vector<1x1x512xf32>,
    %c9 = arith.constant 9 : index
    %23 = memref.load %arg1[%c9] : memref<16xi32, #tpu.memory_space<smem>>
    %24 = arith.index_cast %23 : i32 to index
    %c0_18 = arith.constant 0 : index
    %c0_19 = arith.constant 0 : index
    %25 = vector.load %arg2[%24, %c0_18, %c0_19] : memref<24x1x512xf32, #tpu.memory_space<vmem>>, vector<1x1x512xf32>
    %26 = vector.shape_cast %25 : vector<1x1x512xf32> to vector<1x512xf32>
    %c1_20 = arith.constant 1 : index
    %c1_21 = arith.constant 1 : index
    %c0_22 = arith.constant 0 : index
    %27 = vector.load %arg7[%c1_20, %c1_21, %c0_22] : memref<8x8x512xf32, #tpu.memory_space<vmem>>, vector<1x1x512xf32>
    %28 = vector.shape_cast %27 : vector<1x1x512xf32> to vector<1x512xf32>
    %29 = vector.shape_cast %26 : vector<1x512xf32> to vector<1x1x512xf32>
    tpu.vector_store %arg7[%c1_20, %c1_21, %c0_22], %29 {strides = array<i32>} : memref<8x8x512xf32, #tpu.memory_space<vmem>>, vector<1x1x512xf32>,
    %c2 = arith.constant 2 : index
    %30 = memref.load %arg1[%c2] : memref<16xi32, #tpu.memory_space<smem>>
    %31 = arith.index_cast %30 : i32 to index
    %c0_23 = arith.constant 0 : index
    %c0_24 = arith.constant 0 : index
    %32 = vector.load %arg2[%31, %c0_23, %c0_24] : memref<24x1x512xf32, #tpu.memory_space<vmem>>, vector<1x1x512xf32>
    %33 = vector.shape_cast %32 : vector<1x1x512xf32> to vector<1x512xf32>
    %c2_25 = arith.constant 2 : index
    %c0_26 = arith.constant 0 : index
    %c0_27 = arith.constant 0 : index
    %34 = vector.load %arg7[%c2_25, %c0_26, %c0_27] : memref<8x8x512xf32, #tpu.memory_space<vmem>>, vector<1x1x512xf32>
    %35 = vector.shape_cast %34 : vector<1x1x512xf32> to vector<1x512xf32>
    %36 = vector.shape_cast %33 : vector<1x512xf32> to vector<1x1x512xf32>
    tpu.vector_store %arg7[%c2_25, %c0_26, %c0_27], %36 {strides = array<i32>} : memref<8x8x512xf32, #tpu.memory_space<vmem>>, vector<1x1x512xf32>,
    %c10 = arith.constant 10 : index
    %37 = memref.load %arg1[%c10] : memref<16xi32, #tpu.memory_space<smem>>
    %38 = arith.index_cast %37 : i32 to index
    %c0_28 = arith.constant 0 : index
    %c0_29 = arith.constant 0 : index
    %39 = vector.load %arg2[%38, %c0_28, %c0_29] : memref<24x1x512xf32, #tpu.memory_space<vmem>>, vector<1x1x512xf32>
    %40 = vector.shape_cast %39 : vector<1x1x512xf32> to vector<1x512xf32>
    %c2_30 = arith.constant 2 : index
    %c1_31 = arith.constant 1 : index
    %c0_32 = arith.constant 0 : index
    %41 = vector.load %arg7[%c2_30, %c1_31, %c0_32] : memref<8x8x512xf32, #tpu.memory_space<vmem>>, vector<1x1x512xf32>
    %42 = vector.shape_cast %41 : vector<1x1x512xf32> to vector<1x512xf32>
    %43 = vector.shape_cast %40 : vector<1x512xf32> to vector<1x1x512xf32>
    tpu.vector_store %arg7[%c2_30, %c1_31, %c0_32], %43 {strides = array<i32>} : memref<8x8x512xf32, #tpu.memory_space<vmem>>, vector<1x1x512xf32>,
    %c3 = arith.constant 3 : index
    %44 = memref.load %arg1[%c3] : memref<16xi32, #tpu.memory_space<smem>>
    %45 = arith.index_cast %44 : i32 to index
    %c0_33 = arith.constant 0 : index
    %c0_34 = arith.constant 0 : index
    %46 = vector.load %arg2[%45, %c0_33, %c0_34] : memref<24x1x512xf32, #tpu.memory_space<vmem>>, vector<1x1x512xf32>
    %47 = vector.shape_cast %46 : vector<1x1x512xf32> to vector<1x512xf32>
    %c3_35 = arith.constant 3 : index
    %c0_36 = arith.constant 0 : index
    %c0_37 = arith.constant 0 : index
    %48 = vector.load %arg7[%c3_35, %c0_36, %c0_37] : memref<8x8x512xf32, #tpu.memory_space<vmem>>, vector<1x1x512xf32>
    %49 = vector.shape_cast %48 : vector<1x1x512xf32> to vector<1x512xf32>
    %50 = vector.shape_cast %47 : vector<1x512xf32> to vector<1x1x512xf32>
    tpu.vector_store %arg7[%c3_35, %c0_36, %c0_37], %50 {strides = array<i32>} : memref<8x8x512xf32, #tpu.memory_space<vmem>>, vector<1x1x512xf32>,
    %c11 = arith.constant 11 : index
    %51 = memref.load %arg1[%c11] : memref<16xi32, #tpu.memory_space<smem>>
    %52 = arith.index_cast %51 : i32 to index
    %c0_38 = arith.constant 0 : index
    %c0_39 = arith.constant 0 : index
    %53 = vector.load %arg2[%52, %c0_38, %c0_39] : memref<24x1x512xf32, #tpu.memory_space<vmem>>, vector<1x1x512xf32>
    %54 = vector.shape_cast %53 : vector<1x1x512xf32> to vector<1x512xf32>
    %c3_40 = arith.constant 3 : index
    %c1_41 = arith.constant 1 : index
    %c0_42 = arith.constant 0 : index
    %55 = vector.load %arg7[%c3_40, %c1_41, %c0_42] : memref<8x8x512xf32, #tpu.memory_space<vmem>>, vector<1x1x512xf32>
    %56 = vector.shape_cast %55 : vector<1x1x512xf32> to vector<1x512xf32>
    %57 = vector.shape_cast %54 : vector<1x512xf32> to vector<1x1x512xf32>
    tpu.vector_store %arg7[%c3_40, %c1_41, %c0_42], %57 {strides = array<i32>} : memref<8x8x512xf32, #tpu.memory_space<vmem>>, vector<1x1x512xf32>,
    %c4 = arith.constant 4 : index
    %58 = memref.load %arg1[%c4] : memref<16xi32, #tpu.memory_space<smem>>
    %59 = arith.index_cast %58 : i32 to index
    %c0_43 = arith.constant 0 : index
    %c0_44 = arith.constant 0 : index
    %60 = vector.load %arg2[%59, %c0_43, %c0_44] : memref<24x1x512xf32, #tpu.memory_space<vmem>>, vector<1x1x512xf32>
    %61 = vector.shape_cast %60 : vector<1x1x512xf32> to vector<1x512xf32>
    %c4_45 = arith.constant 4 : index
    %c0_46 = arith.constant 0 : index
    %c0_47 = arith.constant 0 : index
    %62 = vector.load %arg7[%c4_45, %c0_46, %c0_47] : memref<8x8x512xf32, #tpu.memory_space<vmem>>, vector<1x1x512xf32>
    %63 = vector.shape_cast %62 : vector<1x1x512xf32> to vector<1x512xf32>
    %64 = vector.shape_cast %61 : vector<1x512xf32> to vector<1x1x512xf32>
    tpu.vector_store %arg7[%c4_45, %c0_46, %c0_47], %64 {strides = array<i32>} : memref<8x8x512xf32, #tpu.memory_space<vmem>>, vector<1x1x512xf32>,
    %c12 = arith.constant 12 : index
    %65 = memref.load %arg1[%c12] : memref<16xi32, #tpu.memory_space<smem>>
    %66 = arith.index_cast %65 : i32 to index
    %c0_48 = arith.constant 0 : index
    %c0_49 = arith.constant 0 : index
    %67 = vector.load %arg2[%66, %c0_48, %c0_49] : memref<24x1x512xf32, #tpu.memory_space<vmem>>, vector<1x1x512xf32>
    %68 = vector.shape_cast %67 : vector<1x1x512xf32> to vector<1x512xf32>
    %c4_50 = arith.constant 4 : index
    %c1_51 = arith.constant 1 : index
    %c0_52 = arith.constant 0 : index
    %69 = vector.load %arg7[%c4_50, %c1_51, %c0_52] : memref<8x8x512xf32, #tpu.memory_space<vmem>>, vector<1x1x512xf32>
    %70 = vector.shape_cast %69 : vector<1x1x512xf32> to vector<1x512xf32>
    %71 = vector.shape_cast %68 : vector<1x512xf32> to vector<1x1x512xf32>
    tpu.vector_store %arg7[%c4_50, %c1_51, %c0_52], %71 {strides = array<i32>} : memref<8x8x512xf32, #tpu.memory_space<vmem>>, vector<1x1x512xf32>,
    %c5 = arith.constant 5 : index
    %72 = memref.load %arg1[%c5] : memref<16xi32, #tpu.memory_space<smem>>
    %73 = arith.index_cast %72 : i32 to index
    %c0_53 = arith.constant 0 : index
    %c0_54 = arith.constant 0 : index
    %74 = vector.load %arg2[%73, %c0_53, %c0_54] : memref<24x1x512xf32, #tpu.memory_space<vmem>>, vector<1x1x512xf32>
    %75 = vector.shape_cast %74 : vector<1x1x512xf32> to vector<1x512xf32>
    %c5_55 = arith.constant 5 : index
    %c0_56 = arith.constant 0 : index
    %c0_57 = arith.constant 0 : index
    %76 = vector.load %arg7[%c5_55, %c0_56, %c0_57] : memref<8x8x512xf32, #tpu.memory_space<vmem>>, vector<1x1x512xf32>
    %77 = vector.shape_cast %76 : vector<1x1x512xf32> to vector<1x512xf32>
    %78 = vector.shape_cast %75 : vector<1x512xf32> to vector<1x1x512xf32>
    tpu.vector_store %arg7[%c5_55, %c0_56, %c0_57], %78 {strides = array<i32>} : memref<8x8x512xf32, #tpu.memory_space<vmem>>, vector<1x1x512xf32>,
    %c13 = arith.constant 13 : index
    %79 = memref.load %arg1[%c13] : memref<16xi32, #tpu.memory_space<smem>>
    %80 = arith.index_cast %79 : i32 to index
    %c0_58 = arith.constant 0 : index
    %c0_59 = arith.constant 0 : index
    %81 = vector.load %arg2[%80, %c0_58, %c0_59] : memref<24x1x512xf32, #tpu.memory_space<vmem>>, vector<1x1x512xf32>
    %82 = vector.shape_cast %81 : vector<1x1x512xf32> to vector<1x512xf32>
    %c5_60 = arith.constant 5 : index
    %c1_61 = arith.constant 1 : index
    %c0_62 = arith.constant 0 : index
    %83 = vector.load %arg7[%c5_60, %c1_61, %c0_62] : memref<8x8x512xf32, #tpu.memory_space<vmem>>, vector<1x1x512xf32>
    %84 = vector.shape_cast %83 : vector<1x1x512xf32> to vector<1x512xf32>
    %85 = vector.shape_cast %82 : vector<1x512xf32> to vector<1x1x512xf32>
    tpu.vector_store %arg7[%c5_60, %c1_61, %c0_62], %85 {strides = array<i32>} : memref<8x8x512xf32, #tpu.memory_space<vmem>>, vector<1x1x512xf32>,
    %c6 = arith.constant 6 : index
    %86 = memref.load %arg1[%c6] : memref<16xi32, #tpu.memory_space<smem>>
    %87 = arith.index_cast %86 : i32 to index
    %c0_63 = arith.constant 0 : index
    %c0_64 = arith.constant 0 : index
    %88 = vector.load %arg2[%87, %c0_63, %c0_64] : memref<24x1x512xf32, #tpu.memory_space<vmem>>, vector<1x1x512xf32>
    %89 = vector.shape_cast %88 : vector<1x1x512xf32> to vector<1x512xf32>
    %c6_65 = arith.constant 6 : index
    %c0_66 = arith.constant 0 : index
    %c0_67 = arith.constant 0 : index
    %90 = vector.load %arg7[%c6_65, %c0_66, %c0_67] : memref<8x8x512xf32, #tpu.memory_space<vmem>>, vector<1x1x512xf32>
    %91 = vector.shape_cast %90 : vector<1x1x512xf32> to vector<1x512xf32>
    %92 = vector.shape_cast %89 : vector<1x512xf32> to vector<1x1x512xf32>
    tpu.vector_store %arg7[%c6_65, %c0_66, %c0_67], %92 {strides = array<i32>} : memref<8x8x512xf32, #tpu.memory_space<vmem>>, vector<1x1x512xf32>,
    %c14 = arith.constant 14 : index
    %93 = memref.load %arg1[%c14] : memref<16xi32, #tpu.memory_space<smem>>
    %94 = arith.index_cast %93 : i32 to index
    %c0_68 = arith.constant 0 : index
    %c0_69 = arith.constant 0 : index
    %95 = vector.load %arg2[%94, %c0_68, %c0_69] : memref<24x1x512xf32, #tpu.memory_space<vmem>>, vector<1x1x512xf32>
    %96 = vector.shape_cast %95 : vector<1x1x512xf32> to vector<1x512xf32>
    %c6_70 = arith.constant 6 : index
    %c1_71 = arith.constant 1 : index
    %c0_72 = arith.constant 0 : index
    %97 = vector.load %arg7[%c6_70, %c1_71, %c0_72] : memref<8x8x512xf32, #tpu.memory_space<vmem>>, vector<1x1x512xf32>
    %98 = vector.shape_cast %97 : vector<1x1x512xf32> to vector<1x512xf32>
    %99 = vector.shape_cast %96 : vector<1x512xf32> to vector<1x1x512xf32>
    tpu.vector_store %arg7[%c6_70, %c1_71, %c0_72], %99 {strides = array<i32>} : memref<8x8x512xf32, #tpu.memory_space<vmem>>, vector<1x1x512xf32>,
    %c7 = arith.constant 7 : index
    %100 = memref.load %arg1[%c7] : memref<16xi32, #tpu.memory_space<smem>>
    %101 = arith.index_cast %100 : i32 to index
    %c0_73 = arith.constant 0 : index
    %c0_74 = arith.constant 0 : index
    %102 = vector.load %arg2[%101, %c0_73, %c0_74] : memref<24x1x512xf32, #tpu.memory_space<vmem>>, vector<1x1x512xf32>
    %103 = vector.shape_cast %102 : vector<1x1x512xf32> to vector<1x512xf32>
    %c7_75 = arith.constant 7 : index
    %c0_76 = arith.constant 0 : index
    %c0_77 = arith.constant 0 : index
    %104 = vector.load %arg7[%c7_75, %c0_76, %c0_77] : memref<8x8x512xf32, #tpu.memory_space<vmem>>, vector<1x1x512xf32>
    %105 = vector.shape_cast %104 : vector<1x1x512xf32> to vector<1x512xf32>
    %106 = vector.shape_cast %103 : vector<1x512xf32> to vector<1x1x512xf32>
    tpu.vector_store %arg7[%c7_75, %c0_76, %c0_77], %106 {strides = array<i32>} : memref<8x8x512xf32, #tpu.memory_space<vmem>>, vector<1x1x512xf32>,
    %c15 = arith.constant 15 : index
    %107 = memref.load %arg1[%c15] : memref<16xi32, #tpu.memory_space<smem>>
    %108 = arith.index_cast %107 : i32 to index
    %c0_78 = arith.constant 0 : index
    %c0_79 = arith.constant 0 : index
    %109 = vector.load %arg2[%108, %c0_78, %c0_79] : memref<24x1x512xf32, #tpu.memory_space<vmem>>, vector<1x1x512xf32>
    %110 = vector.shape_cast %109 : vector<1x1x512xf32> to vector<1x512xf32>
    %c7_80 = arith.constant 7 : index
    %c1_81 = arith.constant 1 : index
    %c0_82 = arith.constant 0 : index
    %111 = vector.load %arg7[%c7_80, %c1_81, %c0_82] : memref<8x8x512xf32, #tpu.memory_space<vmem>>, vector<1x1x512xf32>
    %112 = vector.shape_cast %111 : vector<1x1x512xf32> to vector<1x512xf32>
    %113 = vector.shape_cast %110 : vector<1x512xf32> to vector<1x1x512xf32>
    tpu.vector_store %arg7[%c7_80, %c1_81, %c0_82], %113 {strides = array<i32>} : memref<8x8x512xf32, #tpu.memory_space<vmem>>, vector<1x1x512xf32>,
    %cst_83 = arith.constant 0.000000e+00 : f32
    %114 = vector.broadcast %cst_83 : f32 to vector<8x128xf32>
    %cst_84 = arith.constant 0.000000e+00 : f32
    %115 = vector.broadcast %cst_84 : f32 to vector<8x128xf32>
    %c0_85 = arith.constant 0 : index
    %c0_86 = arith.constant 0 : index
    %c0_87 = arith.constant 0 : index
    %116 = vector.load %arg7[%c0_85, %c0_86, %c0_87] : memref<8x8x512xf32, #tpu.memory_space<vmem>>, vector<1x8x512xf32>
    %117 = vector.shape_cast %116 : vector<1x8x512xf32> to vector<8x512xf32>
    %c0_88 = arith.constant 0 : index
    %c0_89 = arith.constant 0 : index
    %118 = vector.load %arg3[%c0_88, %c0_89] : memref<128x512xf32, #tpu.memory_space<vmem>>, vector<128x512xf32>
    %cst_90 = arith.constant dense<0.000000e+00> : vector<8x512xf32>
    %119 = tpu.matmul %114, %118, %cst_90 {dimension_numbers = #tpu.dot_dimension_numbers<[1], [0], [0], [1], [0, 0, 1, 1], [], []>} : vector<8x128xf32>, vector<128x512xf32>, vector<8x512xf32> -> vector<8x512xf32>
    %120 = arith.addf %117, %119 : vector<8x512xf32>
    %121 = math.tanh %120 : vector<8x512xf32>
    %122 = vector.extract_strided_slice %121 {offsets = [0, 0], sizes = [8, 128], strides = [1, 1]} : vector<8x512xf32> to vector<8x128xf32>
    %cst_91 = arith.constant 5.000000e-01 : f32
    %123 = vector.broadcast %cst_91 : f32 to vector<8x128xf32>
    %124 = arith.mulf %123, %122 : vector<8x128xf32>
    %cst_92 = arith.constant 5.000000e-01 : f32
    %125 = vector.broadcast %cst_92 : f32 to vector<8x128xf32>
    %126 = arith.addf %124, %125 : vector<8x128xf32>
    %127 = vector.extract_strided_slice %121 {offsets = [0, 128], sizes = [8, 128], strides = [1, 1]} : vector<8x512xf32> to vector<8x128xf32>
    %cst_93 = arith.constant 5.000000e-01 : f32
    %128 = vector.broadcast %cst_93 : f32 to vector<8x128xf32>
    %129 = arith.mulf %128, %127 : vector<8x128xf32>
    %cst_94 = arith.constant 5.000000e-01 : f32
    %130 = vector.broadcast %cst_94 : f32 to vector<8x128xf32>
    %131 = arith.addf %129, %130 : vector<8x128xf32>
    %132 = vector.extract_strided_slice %121 {offsets = [0, 256], sizes = [8, 128], strides = [1, 1]} : vector<8x512xf32> to vector<8x128xf32>
    %133 = vector.extract_strided_slice %121 {offsets = [0, 384], sizes = [8, 128], strides = [1, 1]} : vector<8x512xf32> to vector<8x128xf32>
    %cst_95 = arith.constant 5.000000e-01 : f32
    %134 = vector.broadcast %cst_95 : f32 to vector<8x128xf32>
    %135 = arith.mulf %134, %133 : vector<8x128xf32>
    %cst_96 = arith.constant 5.000000e-01 : f32
    %136 = vector.broadcast %cst_96 : f32 to vector<8x128xf32>
    %137 = arith.addf %135, %136 : vector<8x128xf32>
    %138 = arith.mulf %131, %115 : vector<8x128xf32>
    %139 = arith.mulf %126, %132 : vector<8x128xf32>
    %140 = arith.addf %138, %139 : vector<8x128xf32>
    %141 = math.tanh %140 : vector<8x128xf32>
    %142 = arith.mulf %137, %141 : vector<8x128xf32>
    %c1_97 = arith.constant 1 : index
    %c0_98 = arith.constant 0 : index
    %c0_99 = arith.constant 0 : index
    %143 = vector.load %arg7[%c1_97, %c0_98, %c0_99] : memref<8x8x512xf32, #tpu.memory_space<vmem>>, vector<1x8x512xf32>
    %144 = vector.shape_cast %143 : vector<1x8x512xf32> to vector<8x512xf32>
    %c0_100 = arith.constant 0 : index
    %c0_101 = arith.constant 0 : index
    %145 = vector.load %arg3[%c0_100, %c0_101] : memref<128x512xf32, #tpu.memory_space<vmem>>, vector<128x512xf32>
    %cst_102 = arith.constant dense<0.000000e+00> : vector<8x512xf32>
    %146 = tpu.matmul %142, %145, %cst_102 {dimension_numbers = #tpu.dot_dimension_numbers<[1], [0], [0], [1], [0, 0, 1, 1], [], []>} : vector<8x128xf32>, vector<128x512xf32>, vector<8x512xf32> -> vector<8x512xf32>
    %147 = arith.addf %144, %146 : vector<8x512xf32>
    %148 = math.tanh %147 : vector<8x512xf32>
    %149 = vector.extract_strided_slice %148 {offsets = [0, 0], sizes = [8, 128], strides = [1, 1]} : vector<8x512xf32> to vector<8x128xf32>
    %cst_103 = arith.constant 5.000000e-01 : f32
    %150 = vector.broadcast %cst_103 : f32 to vector<8x128xf32>
    %151 = arith.mulf %150, %149 : vector<8x128xf32>
    %cst_104 = arith.constant 5.000000e-01 : f32
    %152 = vector.broadcast %cst_104 : f32 to vector<8x128xf32>
    %153 = arith.addf %151, %152 : vector<8x128xf32>
    %154 = vector.extract_strided_slice %148 {offsets = [0, 128], sizes = [8, 128], strides = [1, 1]} : vector<8x512xf32> to vector<8x128xf32>
    %cst_105 = arith.constant 5.000000e-01 : f32
    %155 = vector.broadcast %cst_105 : f32 to vector<8x128xf32>
    %156 = arith.mulf %155, %154 : vector<8x128xf32>
    %cst_106 = arith.constant 5.000000e-01 : f32
    %157 = vector.broadcast %cst_106 : f32 to vector<8x128xf32>
    %158 = arith.addf %156, %157 : vector<8x128xf32>
    %159 = vector.extract_strided_slice %148 {offsets = [0, 256], sizes = [8, 128], strides = [1, 1]} : vector<8x512xf32> to vector<8x128xf32>
    %160 = vector.extract_strided_slice %148 {offsets = [0, 384], sizes = [8, 128], strides = [1, 1]} : vector<8x512xf32> to vector<8x128xf32>
    %cst_107 = arith.constant 5.000000e-01 : f32
    %161 = vector.broadcast %cst_107 : f32 to vector<8x128xf32>
    %162 = arith.mulf %161, %160 : vector<8x128xf32>
    %cst_108 = arith.constant 5.000000e-01 : f32
    %163 = vector.broadcast %cst_108 : f32 to vector<8x128xf32>
    %164 = arith.addf %162, %163 : vector<8x128xf32>
    %165 = arith.mulf %158, %140 : vector<8x128xf32>
    %166 = arith.mulf %153, %159 : vector<8x128xf32>
    %167 = arith.addf %165, %166 : vector<8x128xf32>
    %168 = math.tanh %167 : vector<8x128xf32>
    %169 = arith.mulf %164, %168 : vector<8x128xf32>
    %c2_109 = arith.constant 2 : index
    %c0_110 = arith.constant 0 : index
    %c0_111 = arith.constant 0 : index
    %170 = vector.load %arg7[%c2_109, %c0_110, %c0_111] : memref<8x8x512xf32, #tpu.memory_space<vmem>>, vector<1x8x512xf32>
    %171 = vector.shape_cast %170 : vector<1x8x512xf32> to vector<8x512xf32>
    %c0_112 = arith.constant 0 : index
    %c0_113 = arith.constant 0 : index
    %172 = vector.load %arg3[%c0_112, %c0_113] : memref<128x512xf32, #tpu.memory_space<vmem>>, vector<128x512xf32>
    %cst_114 = arith.constant dense<0.000000e+00> : vector<8x512xf32>
    %173 = tpu.matmul %169, %172, %cst_114 {dimension_numbers = #tpu.dot_dimension_numbers<[1], [0], [0], [1], [0, 0, 1, 1], [], []>} : vector<8x128xf32>, vector<128x512xf32>, vector<8x512xf32> -> vector<8x512xf32>
    %174 = arith.addf %171, %173 : vector<8x512xf32>
    %175 = math.tanh %174 : vector<8x512xf32>
    %176 = vector.extract_strided_slice %175 {offsets = [0, 0], sizes = [8, 128], strides = [1, 1]} : vector<8x512xf32> to vector<8x128xf32>
    %cst_115 = arith.constant 5.000000e-01 : f32
    %177 = vector.broadcast %cst_115 : f32 to vector<8x128xf32>
    %178 = arith.mulf %177, %176 : vector<8x128xf32>
    %cst_116 = arith.constant 5.000000e-01 : f32
    %179 = vector.broadcast %cst_116 : f32 to vector<8x128xf32>
    %180 = arith.addf %178, %179 : vector<8x128xf32>
    %181 = vector.extract_strided_slice %175 {offsets = [0, 128], sizes = [8, 128], strides = [1, 1]} : vector<8x512xf32> to vector<8x128xf32>
    %cst_117 = arith.constant 5.000000e-01 : f32
    %182 = vector.broadcast %cst_117 : f32 to vector<8x128xf32>
    %183 = arith.mulf %182, %181 : vector<8x128xf32>
    %cst_118 = arith.constant 5.000000e-01 : f32
    %184 = vector.broadcast %cst_118 : f32 to vector<8x128xf32>
    %185 = arith.addf %183, %184 : vector<8x128xf32>
    %186 = vector.extract_strided_slice %175 {offsets = [0, 256], sizes = [8, 128], strides = [1, 1]} : vector<8x512xf32> to vector<8x128xf32>
    %187 = vector.extract_strided_slice %175 {offsets = [0, 384], sizes = [8, 128], strides = [1, 1]} : vector<8x512xf32> to vector<8x128xf32>
    %cst_119 = arith.constant 5.000000e-01 : f32
    %188 = vector.broadcast %cst_119 : f32 to vector<8x128xf32>
    %189 = arith.mulf %188, %187 : vector<8x128xf32>
    %cst_120 = arith.constant 5.000000e-01 : f32
    %190 = vector.broadcast %cst_120 : f32 to vector<8x128xf32>
    %191 = arith.addf %189, %190 : vector<8x128xf32>
    %192 = arith.mulf %185, %167 : vector<8x128xf32>
    %193 = arith.mulf %180, %186 : vector<8x128xf32>
    %194 = arith.addf %192, %193 : vector<8x128xf32>
    %195 = math.tanh %194 : vector<8x128xf32>
    %196 = arith.mulf %191, %195 : vector<8x128xf32>
    %c3_121 = arith.constant 3 : index
    %c0_122 = arith.constant 0 : index
    %c0_123 = arith.constant 0 : index
    %197 = vector.load %arg7[%c3_121, %c0_122, %c0_123] : memref<8x8x512xf32, #tpu.memory_space<vmem>>, vector<1x8x512xf32>
    %198 = vector.shape_cast %197 : vector<1x8x512xf32> to vector<8x512xf32>
    %c0_124 = arith.constant 0 : index
    %c0_125 = arith.constant 0 : index
    %199 = vector.load %arg3[%c0_124, %c0_125] : memref<128x512xf32, #tpu.memory_space<vmem>>, vector<128x512xf32>
    %cst_126 = arith.constant dense<0.000000e+00> : vector<8x512xf32>
    %200 = tpu.matmul %196, %199, %cst_126 {dimension_numbers = #tpu.dot_dimension_numbers<[1], [0], [0], [1], [0, 0, 1, 1], [], []>} : vector<8x128xf32>, vector<128x512xf32>, vector<8x512xf32> -> vector<8x512xf32>
    %201 = arith.addf %198, %200 : vector<8x512xf32>
    %202 = math.tanh %201 : vector<8x512xf32>
    %203 = vector.extract_strided_slice %202 {offsets = [0, 0], sizes = [8, 128], strides = [1, 1]} : vector<8x512xf32> to vector<8x128xf32>
    %cst_127 = arith.constant 5.000000e-01 : f32
    %204 = vector.broadcast %cst_127 : f32 to vector<8x128xf32>
    %205 = arith.mulf %204, %203 : vector<8x128xf32>
    %cst_128 = arith.constant 5.000000e-01 : f32
    %206 = vector.broadcast %cst_128 : f32 to vector<8x128xf32>
    %207 = arith.addf %205, %206 : vector<8x128xf32>
    %208 = vector.extract_strided_slice %202 {offsets = [0, 128], sizes = [8, 128], strides = [1, 1]} : vector<8x512xf32> to vector<8x128xf32>
    %cst_129 = arith.constant 5.000000e-01 : f32
    %209 = vector.broadcast %cst_129 : f32 to vector<8x128xf32>
    %210 = arith.mulf %209, %208 : vector<8x128xf32>
    %cst_130 = arith.constant 5.000000e-01 : f32
    %211 = vector.broadcast %cst_130 : f32 to vector<8x128xf32>
    %212 = arith.addf %210, %211 : vector<8x128xf32>
    %213 = vector.extract_strided_slice %202 {offsets = [0, 256], sizes = [8, 128], strides = [1, 1]} : vector<8x512xf32> to vector<8x128xf32>
    %214 = vector.extract_strided_slice %202 {offsets = [0, 384], sizes = [8, 128], strides = [1, 1]} : vector<8x512xf32> to vector<8x128xf32>
    %cst_131 = arith.constant 5.000000e-01 : f32
    %215 = vector.broadcast %cst_131 : f32 to vector<8x128xf32>
    %216 = arith.mulf %215, %214 : vector<8x128xf32>
    %cst_132 = arith.constant 5.000000e-01 : f32
    %217 = vector.broadcast %cst_132 : f32 to vector<8x128xf32>
    %218 = arith.addf %216, %217 : vector<8x128xf32>
    %219 = arith.mulf %212, %194 : vector<8x128xf32>
    %220 = arith.mulf %207, %213 : vector<8x128xf32>
    %221 = arith.addf %219, %220 : vector<8x128xf32>
    %222 = math.tanh %221 : vector<8x128xf32>
    %223 = arith.mulf %218, %222 : vector<8x128xf32>
    %c4_133 = arith.constant 4 : index
    %c0_134 = arith.constant 0 : index
    %c0_135 = arith.constant 0 : index
    %224 = vector.load %arg7[%c4_133, %c0_134, %c0_135] : memref<8x8x512xf32, #tpu.memory_space<vmem>>, vector<1x8x512xf32>
    %225 = vector.shape_cast %224 : vector<1x8x512xf32> to vector<8x512xf32>
    %c0_136 = arith.constant 0 : index
    %c0_137 = arith.constant 0 : index
    %226 = vector.load %arg3[%c0_136, %c0_137] : memref<128x512xf32, #tpu.memory_space<vmem>>, vector<128x512xf32>
    %cst_138 = arith.constant dense<0.000000e+00> : vector<8x512xf32>
    %227 = tpu.matmul %223, %226, %cst_138 {dimension_numbers = #tpu.dot_dimension_numbers<[1], [0], [0], [1], [0, 0, 1, 1], [], []>} : vector<8x128xf32>, vector<128x512xf32>, vector<8x512xf32> -> vector<8x512xf32>
    %228 = arith.addf %225, %227 : vector<8x512xf32>
    %229 = math.tanh %228 : vector<8x512xf32>
    %230 = vector.extract_strided_slice %229 {offsets = [0, 0], sizes = [8, 128], strides = [1, 1]} : vector<8x512xf32> to vector<8x128xf32>
    %cst_139 = arith.constant 5.000000e-01 : f32
    %231 = vector.broadcast %cst_139 : f32 to vector<8x128xf32>
    %232 = arith.mulf %231, %230 : vector<8x128xf32>
    %cst_140 = arith.constant 5.000000e-01 : f32
    %233 = vector.broadcast %cst_140 : f32 to vector<8x128xf32>
    %234 = arith.addf %232, %233 : vector<8x128xf32>
    %235 = vector.extract_strided_slice %229 {offsets = [0, 128], sizes = [8, 128], strides = [1, 1]} : vector<8x512xf32> to vector<8x128xf32>
    %cst_141 = arith.constant 5.000000e-01 : f32
    %236 = vector.broadcast %cst_141 : f32 to vector<8x128xf32>
    %237 = arith.mulf %236, %235 : vector<8x128xf32>
    %cst_142 = arith.constant 5.000000e-01 : f32
    %238 = vector.broadcast %cst_142 : f32 to vector<8x128xf32>
    %239 = arith.addf %237, %238 : vector<8x128xf32>
    %240 = vector.extract_strided_slice %229 {offsets = [0, 256], sizes = [8, 128], strides = [1, 1]} : vector<8x512xf32> to vector<8x128xf32>
    %241 = vector.extract_strided_slice %229 {offsets = [0, 384], sizes = [8, 128], strides = [1, 1]} : vector<8x512xf32> to vector<8x128xf32>
    %cst_143 = arith.constant 5.000000e-01 : f32
    %242 = vector.broadcast %cst_143 : f32 to vector<8x128xf32>
    %243 = arith.mulf %242, %241 : vector<8x128xf32>
    %cst_144 = arith.constant 5.000000e-01 : f32
    %244 = vector.broadcast %cst_144 : f32 to vector<8x128xf32>
    %245 = arith.addf %243, %244 : vector<8x128xf32>
    %246 = arith.mulf %239, %221 : vector<8x128xf32>
    %247 = arith.mulf %234, %240 : vector<8x128xf32>
    %248 = arith.addf %246, %247 : vector<8x128xf32>
    %249 = math.tanh %248 : vector<8x128xf32>
    %250 = arith.mulf %245, %249 : vector<8x128xf32>
    %c5_145 = arith.constant 5 : index
    %c0_146 = arith.constant 0 : index
    %c0_147 = arith.constant 0 : index
    %251 = vector.load %arg7[%c5_145, %c0_146, %c0_147] : memref<8x8x512xf32, #tpu.memory_space<vmem>>, vector<1x8x512xf32>
    %252 = vector.shape_cast %251 : vector<1x8x512xf32> to vector<8x512xf32>
    %c0_148 = arith.constant 0 : index
    %c0_149 = arith.constant 0 : index
    %253 = vector.load %arg3[%c0_148, %c0_149] : memref<128x512xf32, #tpu.memory_space<vmem>>, vector<128x512xf32>
    %cst_150 = arith.constant dense<0.000000e+00> : vector<8x512xf32>
    %254 = tpu.matmul %250, %253, %cst_150 {dimension_numbers = #tpu.dot_dimension_numbers<[1], [0], [0], [1], [0, 0, 1, 1], [], []>} : vector<8x128xf32>, vector<128x512xf32>, vector<8x512xf32> -> vector<8x512xf32>
    %255 = arith.addf %252, %254 : vector<8x512xf32>
    %256 = math.tanh %255 : vector<8x512xf32>
    %257 = vector.extract_strided_slice %256 {offsets = [0, 0], sizes = [8, 128], strides = [1, 1]} : vector<8x512xf32> to vector<8x128xf32>
    %cst_151 = arith.constant 5.000000e-01 : f32
    %258 = vector.broadcast %cst_151 : f32 to vector<8x128xf32>
    %259 = arith.mulf %258, %257 : vector<8x128xf32>
    %cst_152 = arith.constant 5.000000e-01 : f32
    %260 = vector.broadcast %cst_152 : f32 to vector<8x128xf32>
    %261 = arith.addf %259, %260 : vector<8x128xf32>
    %262 = vector.extract_strided_slice %256 {offsets = [0, 128], sizes = [8, 128], strides = [1, 1]} : vector<8x512xf32> to vector<8x128xf32>
    %cst_153 = arith.constant 5.000000e-01 : f32
    %263 = vector.broadcast %cst_153 : f32 to vector<8x128xf32>
    %264 = arith.mulf %263, %262 : vector<8x128xf32>
    %cst_154 = arith.constant 5.000000e-01 : f32
    %265 = vector.broadcast %cst_154 : f32 to vector<8x128xf32>
    %266 = arith.addf %264, %265 : vector<8x128xf32>
    %267 = vector.extract_strided_slice %256 {offsets = [0, 256], sizes = [8, 128], strides = [1, 1]} : vector<8x512xf32> to vector<8x128xf32>
    %268 = vector.extract_strided_slice %256 {offsets = [0, 384], sizes = [8, 128], strides = [1, 1]} : vector<8x512xf32> to vector<8x128xf32>
    %cst_155 = arith.constant 5.000000e-01 : f32
    %269 = vector.broadcast %cst_155 : f32 to vector<8x128xf32>
    %270 = arith.mulf %269, %268 : vector<8x128xf32>
    %cst_156 = arith.constant 5.000000e-01 : f32
    %271 = vector.broadcast %cst_156 : f32 to vector<8x128xf32>
    %272 = arith.addf %270, %271 : vector<8x128xf32>
    %273 = arith.mulf %266, %248 : vector<8x128xf32>
    %274 = arith.mulf %261, %267 : vector<8x128xf32>
    %275 = arith.addf %273, %274 : vector<8x128xf32>
    %276 = math.tanh %275 : vector<8x128xf32>
    %277 = arith.mulf %272, %276 : vector<8x128xf32>
    %c6_157 = arith.constant 6 : index
    %c0_158 = arith.constant 0 : index
    %c0_159 = arith.constant 0 : index
    %278 = vector.load %arg7[%c6_157, %c0_158, %c0_159] : memref<8x8x512xf32, #tpu.memory_space<vmem>>, vector<1x8x512xf32>
    %279 = vector.shape_cast %278 : vector<1x8x512xf32> to vector<8x512xf32>
    %c0_160 = arith.constant 0 : index
    %c0_161 = arith.constant 0 : index
    %280 = vector.load %arg3[%c0_160, %c0_161] : memref<128x512xf32, #tpu.memory_space<vmem>>, vector<128x512xf32>
    %cst_162 = arith.constant dense<0.000000e+00> : vector<8x512xf32>
    %281 = tpu.matmul %277, %280, %cst_162 {dimension_numbers = #tpu.dot_dimension_numbers<[1], [0], [0], [1], [0, 0, 1, 1], [], []>} : vector<8x128xf32>, vector<128x512xf32>, vector<8x512xf32> -> vector<8x512xf32>
    %282 = arith.addf %279, %281 : vector<8x512xf32>
    %283 = math.tanh %282 : vector<8x512xf32>
    %284 = vector.extract_strided_slice %283 {offsets = [0, 0], sizes = [8, 128], strides = [1, 1]} : vector<8x512xf32> to vector<8x128xf32>
    %cst_163 = arith.constant 5.000000e-01 : f32
    %285 = vector.broadcast %cst_163 : f32 to vector<8x128xf32>
    %286 = arith.mulf %285, %284 : vector<8x128xf32>
    %cst_164 = arith.constant 5.000000e-01 : f32
    %287 = vector.broadcast %cst_164 : f32 to vector<8x128xf32>
    %288 = arith.addf %286, %287 : vector<8x128xf32>
    %289 = vector.extract_strided_slice %283 {offsets = [0, 128], sizes = [8, 128], strides = [1, 1]} : vector<8x512xf32> to vector<8x128xf32>
    %cst_165 = arith.constant 5.000000e-01 : f32
    %290 = vector.broadcast %cst_165 : f32 to vector<8x128xf32>
    %291 = arith.mulf %290, %289 : vector<8x128xf32>
    %cst_166 = arith.constant 5.000000e-01 : f32
    %292 = vector.broadcast %cst_166 : f32 to vector<8x128xf32>
    %293 = arith.addf %291, %292 : vector<8x128xf32>
    %294 = vector.extract_strided_slice %283 {offsets = [0, 256], sizes = [8, 128], strides = [1, 1]} : vector<8x512xf32> to vector<8x128xf32>
    %295 = vector.extract_strided_slice %283 {offsets = [0, 384], sizes = [8, 128], strides = [1, 1]} : vector<8x512xf32> to vector<8x128xf32>
    %cst_167 = arith.constant 5.000000e-01 : f32
    %296 = vector.broadcast %cst_167 : f32 to vector<8x128xf32>
    %297 = arith.mulf %296, %295 : vector<8x128xf32>
    %cst_168 = arith.constant 5.000000e-01 : f32
    %298 = vector.broadcast %cst_168 : f32 to vector<8x128xf32>
    %299 = arith.addf %297, %298 : vector<8x128xf32>
    %300 = arith.mulf %293, %275 : vector<8x128xf32>
    %301 = arith.mulf %288, %294 : vector<8x128xf32>
    %302 = arith.addf %300, %301 : vector<8x128xf32>
    %303 = math.tanh %302 : vector<8x128xf32>
    %304 = arith.mulf %299, %303 : vector<8x128xf32>
    %c7_169 = arith.constant 7 : index
    %c0_170 = arith.constant 0 : index
    %c0_171 = arith.constant 0 : index
    %305 = vector.load %arg7[%c7_169, %c0_170, %c0_171] : memref<8x8x512xf32, #tpu.memory_space<vmem>>, vector<1x8x512xf32>
    %306 = vector.shape_cast %305 : vector<1x8x512xf32> to vector<8x512xf32>
    %c0_172 = arith.constant 0 : index
    %c0_173 = arith.constant 0 : index
    %307 = vector.load %arg3[%c0_172, %c0_173] : memref<128x512xf32, #tpu.memory_space<vmem>>, vector<128x512xf32>
    %cst_174 = arith.constant dense<0.000000e+00> : vector<8x512xf32>
    %308 = tpu.matmul %304, %307, %cst_174 {dimension_numbers = #tpu.dot_dimension_numbers<[1], [0], [0], [1], [0, 0, 1, 1], [], []>} : vector<8x128xf32>, vector<128x512xf32>, vector<8x512xf32> -> vector<8x512xf32>
    %309 = arith.addf %306, %308 : vector<8x512xf32>
    %310 = math.tanh %309 : vector<8x512xf32>
    %311 = vector.extract_strided_slice %310 {offsets = [0, 0], sizes = [8, 128], strides = [1, 1]} : vector<8x512xf32> to vector<8x128xf32>
    %cst_175 = arith.constant 5.000000e-01 : f32
    %312 = vector.broadcast %cst_175 : f32 to vector<8x128xf32>
    %313 = arith.mulf %312, %311 : vector<8x128xf32>
    %cst_176 = arith.constant 5.000000e-01 : f32
    %314 = vector.broadcast %cst_176 : f32 to vector<8x128xf32>
    %315 = arith.addf %313, %314 : vector<8x128xf32>
    %316 = vector.extract_strided_slice %310 {offsets = [0, 128], sizes = [8, 128], strides = [1, 1]} : vector<8x512xf32> to vector<8x128xf32>
    %cst_177 = arith.constant 5.000000e-01 : f32
    %317 = vector.broadcast %cst_177 : f32 to vector<8x128xf32>
    %318 = arith.mulf %317, %316 : vector<8x128xf32>
    %cst_178 = arith.constant 5.000000e-01 : f32
    %319 = vector.broadcast %cst_178 : f32 to vector<8x128xf32>
    %320 = arith.addf %318, %319 : vector<8x128xf32>
    %321 = vector.extract_strided_slice %310 {offsets = [0, 256], sizes = [8, 128], strides = [1, 1]} : vector<8x512xf32> to vector<8x128xf32>
    %322 = vector.extract_strided_slice %310 {offsets = [0, 384], sizes = [8, 128], strides = [1, 1]} : vector<8x512xf32> to vector<8x128xf32>
    %cst_179 = arith.constant 5.000000e-01 : f32
    %323 = vector.broadcast %cst_179 : f32 to vector<8x128xf32>
    %324 = arith.mulf %323, %322 : vector<8x128xf32>
    %cst_180 = arith.constant 5.000000e-01 : f32
    %325 = vector.broadcast %cst_180 : f32 to vector<8x128xf32>
    %326 = arith.addf %324, %325 : vector<8x128xf32>
    %327 = arith.mulf %320, %302 : vector<8x128xf32>
    %328 = arith.mulf %315, %321 : vector<8x128xf32>
    %329 = arith.addf %327, %328 : vector<8x128xf32>
    %330 = math.tanh %329 : vector<8x128xf32>
    %331 = arith.mulf %326, %330 : vector<8x128xf32>
    %c0_181 = arith.constant 0 : index
    %c0_182 = arith.constant 0 : index
    %332 = vector.load %arg4[%c0_181, %c0_182] : memref<128x128xf32, #tpu.memory_space<vmem>>, vector<128x128xf32>
    %cst_183 = arith.constant dense<0.000000e+00> : vector<8x128xf32>
    %333 = tpu.matmul %331, %332, %cst_183 {dimension_numbers = #tpu.dot_dimension_numbers<[1], [0], [0], [1], [0, 0, 1, 1], [], []>} : vector<8x128xf32>, vector<128x128xf32>, vector<8x128xf32> -> vector<8x128xf32>
    %c0_184 = arith.constant 0 : index
    %c0_185 = arith.constant 0 : index
    %334 = vector.load %arg5[%c0_184, %c0_185] : memref<1x128xf32, #tpu.memory_space<vmem>>, vector<1x128xf32>
    %335 = vector.broadcast %334 : vector<1x128xf32> to vector<8x128xf32>
    %336 = arith.addf %333, %335 : vector<8x128xf32>
    %c0_186 = arith.constant 0 : index
    %c0_187 = arith.constant 0 : index
    %337 = vector.load %arg6[%c0_186, %c0_187] : memref<8x128xf32, #tpu.memory_space<vmem>>, vector<8x128xf32>
    tpu.vector_store %arg6[%c0_186, %c0_187], %336 {strides = array<i32>} : memref<8x128xf32, #tpu.memory_space<vmem>>, vector<8x128xf32>,
    return
  }
  func.func @transform_0(%arg0: i32, %arg1: memref<16xi32, #tpu.memory_space<smem>>) -> (i32, i32, i32) {
    %c0_i32 = arith.constant 0 : i32
    %c0_i32_0 = arith.constant 0 : i32
    %c0_i32_1 = arith.constant 0 : i32
    %c0_i32_2 = arith.constant 0 : i32
    return %c0_i32, %c0_i32_0, %c0_i32_1 : i32, i32, i32
  }
  func.func @transform_1(%arg0: i32, %arg1: memref<16xi32, #tpu.memory_space<smem>>) -> (i32, i32) {
    %c0_i32 = arith.constant 0 : i32
    %c0_i32_0 = arith.constant 0 : i32
    %c0_i32_1 = arith.constant 0 : i32
    return %c0_i32, %c0_i32_0 : i32, i32
  }
  func.func @transform_2(%arg0: i32, %arg1: memref<16xi32, #tpu.memory_space<smem>>) -> (i32, i32) {
    %c0_i32 = arith.constant 0 : i32
    %c0_i32_0 = arith.constant 0 : i32
    %c0_i32_1 = arith.constant 0 : i32
    return %c0_i32, %c0_i32_0 : i32, i32
  }
  func.func @transform_3(%arg0: i32, %arg1: memref<16xi32, #tpu.memory_space<smem>>) -> (i32, i32) {
    %c0_i32 = arith.constant 0 : i32
    %c0_i32_0 = arith.constant 0 : i32
    %c0_i32_1 = arith.constant 0 : i32
    return %c0_i32, %c0_i32_0 : i32, i32
  }
  func.func @transform_4(%arg0: i32, %arg1: memref<16xi32, #tpu.memory_space<smem>>) -> (i32, i32) {
    %c0_i32 = arith.constant 0 : i32
    %c0_i32_0 = arith.constant 0 : i32
    %c0_i32_1 = arith.constant 0 : i32
    return %c0_i32, %c0_i32_0 : i32, i32
  }
}

</mosaic_0001>

<llo_original>
// kernel: text_lstm_forward.1
$region0: #{text_lstm_forward.1}
  #allocation0 [shape = 'u32[]', space=smem, size = 0x4, offset = 0x4, fixed_abs, tag = 'smem constant byte address 0x4 - core index']
  #allocation1 [shape = 'u32[144,128]{1,0:T(1,128)}', space=vmem, size = 0x12000, scoped, tag = 'internal scratch']
  #allocation2 [shape = 'f32[8,8,512]{2,1,0:T(8,128)}', space=vmem, size = 0x20000, scoped, tag = 'scratch operand']
  #allocation3 [shape = 's32[1]{0}', space=sflag, size = 0x4, scoped, tag = 'scoped memory for text_lstm_forward.1']
  #allocation4 [shape = 'u8[512]{0}', space=smem, size = 0x200, scoped, tag = 'prefetched SMEM operand 0']
  %s0 = inlined_call_operand.vmem [shape: s32[16], index: 0, kind: input, shape index: {}]
  %s1 = inlined_call_operand.hbm [shape: f32[24,1,512], index: 1, kind: input, shape index: {}]
  %s2 = inlined_call_operand.hbm [shape: f32[128,512], index: 2, kind: input, shape index: {}]
  %s3 = inlined_call_operand.hbm [shape: f32[128,128], index: 3, kind: input, shape index: {}]
  %s4 = inlined_call_operand.vmem [shape: f32[1,128], index: 4, kind: input, shape index: {}]
  %s5 = inlined_call_operand.vmem [shape: f32[8,128], index: 5, kind: output, shape index: {}]
  %s6 = sld [smem:[#allocation0]]
  $region38: #{text_lstm_forward.1} parent=0
    _
  %s8 = ssub.s32 1, %s6
  %s9 = scalar_select 0, %s8, %s6
  %s10 = sshll.u32 %s0, 4
  %s11 = int_to_ptr.vmem [resolvable:$true] %s10
  %13 = dma.vmem_to_smem %s11, 16, [#allocation4], [#allocation3]
  %14 = dma.done [#allocation3], 16
  %15 = sfence
  $region1: #{text_lstm_forward.1} parent=0
    #allocation5 [shape = 'u8[49152]{0}', space=vmem, size = 0xc000, scoped, tag = 'input window, operand 1, single buffered']
    #allocation6 [shape = 's32[1]{0}', space=sflag, size = 0x4, scoped, tag = 'scoped memory for text_lstm_forward.1']
    #allocation7 [shape = 'u8[262144]{0}', space=vmem, size = 0x40000, scoped, tag = 'input window, operand 2, single buffered']
    #allocation8 [shape = 's32[1]{0}', space=sflag, size = 0x4, scoped, tag = 'scoped memory for text_lstm_forward.1']
    #allocation9 [shape = 'u8[65536]{0}', space=vmem, size = 0x10000, scoped, tag = 'input window, operand 3, single buffered']
    %16 = vsyncpa [#allocation6], 0
    %17 = vsyncpa [#allocation8], 0
    // Predicated region
    $region2: #{text_lstm_forward.1} parent=1 // pred_check
      _
    $region3: #{text_lstm_forward.1} parent=1 // pred_check_branch
      %19 = sbr.rel (0) target = $region5
    $region4: #{text_lstm_forward.1} parent=1 // pred_region
      %s21 = ssub.s32 1536, 1536
      %22 = vsyncadd [#allocation6], %s21
      %s23 = sshll.u32 [#allocation5], 4
      %s24 = int_to_ptr.vmem [resolvable:$true] %s23
      %29 = dma.hbm_to_vmem [thread:$0]  %s1, 1536, %s24, [#allocation6], 64, 64, 4
    $region5: #{text_lstm_forward.1} parent=1 // pred_fallthru
      _
    // Predicated region
    $region6: #{text_lstm_forward.1} parent=1 // pred_check
      _
    $region7: #{text_lstm_forward.1} parent=1 // pred_check_branch
      %31 = sbr.rel (0) target = $region9
    $region8: #{text_lstm_forward.1} parent=1 // pred_region
      %s33 = ssub.s32 8192, 8192
      %34 = vsyncadd [#allocation8], %s33
      %s35 = sshll.u32 [#allocation7], 4
      %s36 = int_to_ptr.vmem [resolvable:$true] %s35
      %41 = dma.hbm_to_vmem [thread:$0]  %s2, 8192, %s36, [#allocation8], 512, 512, 32
    $region9: #{text_lstm_forward.1} parent=1 // pred_fallthru
      _
    // Predicated region
    $region10: #{text_lstm_forward.1} parent=1 // pred_check
      _
    $region11: #{text_lstm_forward.1} parent=1 // pred_check_branch
      %43 = sbr.rel (0) target = $region13
    $region12: #{text_lstm_forward.1} parent=1 // pred_region
      %s45 = ssub.s32 2048, 2048
      %46 = vsyncadd [#allocation8], %s45
      %s47 = sshll.u32 [#allocation9], 4
      %s48 = int_to_ptr.vmem [resolvable:$true] %s47
      %53 = dma.hbm_to_vmem [thread:$0]  %s3, 2048, %s48, [#allocation8], 128, 128, 8
    $region13: #{text_lstm_forward.1} parent=1 // pred_fallthru
      _
    // Predicated region
    $region14: #{text_lstm_forward.1} parent=1 // pred_check
      _
    $region15: #{text_lstm_forward.1} parent=1 // pred_check_branch
      %55 = sbr.rel (0) target = $region17
    $region16: #{text_lstm_forward.1} parent=1 // pred_region
      _
    $region17: #{text_lstm_forward.1} parent=1 // pred_fallthru
      _
    // Predicated region
    $region18: #{text_lstm_forward.1} parent=1 // pred_check
      _
    $region19: #{text_lstm_forward.1} parent=1 // pred_check_branch
      %57 = sbr.rel (0) target = $region21
    $region20: #{text_lstm_forward.1} parent=1 // pred_region
      %58 = dma.done [#allocation6], 1536
    $region21: #{text_lstm_forward.1} parent=1 // pred_fallthru
      _
    // Predicated region
    $region22: #{text_lstm_forward.1} parent=1 // pred_check
      _
    $region23: #{text_lstm_forward.1} parent=1 // pred_check_branch
      %60 = sbr.rel (0) target = $region25
    $region24: #{text_lstm_forward.1} parent=1 // pred_region
      %61 = dma.done [#allocation8], 8192
    $region25: #{text_lstm_forward.1} parent=1 // pred_fallthru
      _
    // Predicated region
    $region26: #{text_lstm_forward.1} parent=1 // pred_check
      _
    $region27: #{text_lstm_forward.1} parent=1 // pred_check_branch
      %63 = sbr.rel (0) target = $region29
    $region28: #{text_lstm_forward.1} parent=1 // pred_region
      %64 = dma.done [#allocation8], 2048
    $region29: #{text_lstm_forward.1} parent=1 // pred_fallthru
      _
    %65 = vst [vmem:[#allocation2] sm:$0xff] 0.0
    %66 = vst [vmem:[#allocation2 + $0x8] sm:$0xff] 0.0
    %67 = vst [vmem:[#allocation2 + $0x10] sm:$0xff] 0.0
    %68 = vst [vmem:[#allocation2 + $0x18] sm:$0xff] 0.0
    %69 = vst [vmem:[#allocation2 + $0x20] sm:$0xff] 0.0
    %70 = vst [vmem:[#allocation2 + $0x28] sm:$0xff] 0.0
    %71 = vst [vmem:[#allocation2 + $0x30] sm:$0xff] 0.0
    %72 = vst [vmem:[#allocation2 + $0x38] sm:$0xff] 0.0
    %73 = vst [vmem:[#allocation2 + $0x40] sm:$0xff] 0.0
    %74 = vst [vmem:[#allocation2 + $0x48] sm:$0xff] 0.0
    %75 = vst [vmem:[#allocation2 + $0x50] sm:$0xff] 0.0
    %76 = vst [vmem:[#allocation2 + $0x58] sm:$0xff] 0.0
    %77 = vst [vmem:[#allocation2 + $0x60] sm:$0xff] 0.0
    %78 = vst [vmem:[#allocation2 + $0x68] sm:$0xff] 0.0
    %79 = vst [vmem:[#allocation2 + $0x70] sm:$0xff] 0.0
    %80 = vst [vmem:[#allocation2 + $0x78] sm:$0xff] 0.0
    %81 = vst [vmem:[#allocation2 + $0x80] sm:$0xff] 0.0
    %82 = vst [vmem:[#allocation2 + $0x88] sm:$0xff] 0.0
    %83 = vst [vmem:[#allocation2 + $0x90] sm:$0xff] 0.0
    %84 = vst [vmem:[#allocation2 + $0x98] sm:$0xff] 0.0
    %85 = vst [vmem:[#allocation2 + $0xa0] sm:$0xff] 0.0
    %86 = vst [vmem:[#allocation2 + $0xa8] sm:$0xff] 0.0
    %87 = vst [vmem:[#allocation2 + $0xb0] sm:$0xff] 0.0
    %88 = vst [vmem:[#allocation2 + $0xb8] sm:$0xff] 0.0
    %89 = vst [vmem:[#allocation2 + $0xc0] sm:$0xff] 0.0
    %90 = vst [vmem:[#allocation2 + $0xc8] sm:$0xff] 0.0
    %91 = vst [vmem:[#allocation2 + $0xd0] sm:$0xff] 0.0
    %92 = vst [vmem:[#allocation2 + $0xd8] sm:$0xff] 0.0
    %93 = vst [vmem:[#allocation2 + $0xe0] sm:$0xff] 0.0
    %94 = vst [vmem:[#allocation2 + $0xe8] sm:$0xff] 0.0
    %95 = vst [vmem:[#allocation2 + $0xf0] sm:$0xff] 0.0
    %96 = vst [vmem:[#allocation2 + $0xf8] sm:$0xff] 0.0
    %s97 = sld [smem:[#allocation4]]
    %s98 = smul.u32 %s97, 4
    %s99 = scalar_lea.vmem [#allocation5], %s98
    %v100 = vld [vmem:[%s99] sm:$0xf]
    %v101 = vlaneseq
    %vm102 = vcmp.ge.s32.totalorder %v101, 0
    %vm103 = vcmp.lt.s32.totalorder %v101, 512
    %vm104 = vmand %vm102, %vm103
    %105 = vst.msk [vmem:[#allocation2] ss:$8 sm:$0xf] %vm104, %v100
    %106 = vst.msk [vmem:[#allocation2] ss:$8 sm:$0x0] %vm104, %v100
    %s107 = sld [smem:[#allocation4 + $0x8]]
    %s108 = smul.u32 %s107, 4
    %s109 = scalar_lea.vmem [#allocation5], %s108
    %v110 = vld [vmem:[%s109] sm:$0xf]
    %s111 = scalar_lea.vmem [#allocation2], 1
    %112 = vst.msk [vmem:[%s111] ss:$8 sm:$0xf] %vm104, %v110
    %113 = vst.msk [vmem:[%s111] ss:$8 sm:$0x0] %vm104, %v110
    %s114 = sld [smem:[#allocation4 + $0x1]]
    %s115 = smul.u32 %s114, 4
    %s116 = scalar_lea.vmem [#allocation5], %s115
    %v117 = vld [vmem:[%s116] sm:$0xf]
    %s118 = scalar_lea.vmem [#allocation2], 32
    %119 = vst.msk [vmem:[%s118] ss:$8 sm:$0xf] %vm104, %v117
    %120 = vst.msk [vmem:[%s118] ss:$8 sm:$0x0] %vm104, %v117
    %s121 = sld [smem:[#allocation4 + $0x9]]
    %s122 = smul.u32 %s121, 4
    %s123 = scalar_lea.vmem [#allocation5], %s122
    %v124 = vld [vmem:[%s123] sm:$0xf]
    %s125 = scalar_lea.vmem %s118, 1 [#allocation2]
    %126 = vst.msk [vmem:[%s125] ss:$8 sm:$0xf] %vm104, %v124
    %127 = vst.msk [vmem:[%s125] ss:$8 sm:$0x0] %vm104, %v124
    %s128 = sld [smem:[#allocation4 + $0x2]]
    %s129 = smul.u32 %s128, 4
    %s130 = scalar_lea.vmem [#allocation5], %s129
    %v131 = vld [vmem:[%s130] sm:$0xf]
    %s132 = scalar_lea.vmem [#allocation2], 64
    %133 = vst.msk [vmem:[%s132] ss:$8 sm:$0xf] %vm104, %v131
    %134 = vst.msk [vmem:[%s132] ss:$8 sm:$0x0] %vm104, %v131
    %s135 = sld [smem:[#allocation4 + $0xa]]
    %s136 = smul.u32 %s135, 4
    %s137 = scalar_lea.vmem [#allocation5], %s136
    %v138 = vld [vmem:[%s137] sm:$0xf]
    %s139 = scalar_lea.vmem %s132, 1 [#allocation2]
    %140 = vst.msk [vmem:[%s139] ss:$8 sm:$0xf] %vm104, %v138
    %141 = vst.msk [vmem:[%s139] ss:$8 sm:$0x0] %vm104, %v138
    %s142 = sld [smem:[#allocation4 + $0x3]]
    %s143 = smul.u32 %s142, 4
    %s144 = scalar_lea.vmem [#allocation5], %s143
    %v145 = vld [vmem:[%s144] sm:$0xf]
    %s146 = scalar_lea.vmem [#allocation2], 96
    %147 = vst.msk [vmem:[%s146] ss:$8 sm:$0xf] %vm104, %v145
    %148 = vst.msk [vmem:[%s146] ss:$8 sm:$0x0] %vm104, %v145
    %s149 = sld [smem:[#allocation4 + $0xb]]
    %s150 = smul.u32 %s149, 4
    %s151 = scalar_lea.vmem [#allocation5], %s150
    %v152 = vld [vmem:[%s151] sm:$0xf]
    %s153 = scalar_lea.vmem %s146, 1 [#allocation2]
    %154 = vst.msk [vmem:[%s153] ss:$8 sm:$0xf] %vm104, %v152
    %155 = vst.msk [vmem:[%s153] ss:$8 sm:$0x0] %vm104, %v152
    %s156 = sld [smem:[#allocation4 + $0x4]]
    %s157 = smul.u32 %s156, 4
    %s158 = scalar_lea.vmem [#allocation5], %s157
    %v159 = vld [vmem:[%s158] sm:$0xf]
    %s160 = scalar_lea.vmem [#allocation2], 128
    %161 = vst.msk [vmem:[%s160] ss:$8 sm:$0xf] %vm104, %v159
    %162 = vst.msk [vmem:[%s160] ss:$8 sm:$0x0] %vm104, %v159
    %s163 = sld [smem:[#allocation4 + $0xc]]
    %s164 = smul.u32 %s163, 4
    %s165 = scalar_lea.vmem [#allocation5], %s164
    %v166 = vld [vmem:[%s165] sm:$0xf]
    %s167 = scalar_lea.vmem %s160, 1 [#allocation2]
    %168 = vst.msk [vmem:[%s167] ss:$8 sm:$0xf] %vm104, %v166
    %169 = vst.msk [vmem:[%s167] ss:$8 sm:$0x0] %vm104, %v166
    %s170 = sld [smem:[#allocation4 + $0x5]]
    %s171 = smul.u32 %s170, 4
    %s172 = scalar_lea.vmem [#allocation5], %s171
    %v173 = vld [vmem:[%s172] sm:$0xf]
    %s174 = scalar_lea.vmem [#allocation2], 160
    %175 = vst.msk [vmem:[%s174] ss:$8 sm:$0xf] %vm104, %v173
    %176 = vst.msk [vmem:[%s174] ss:$8 sm:$0x0] %vm104, %v173
    %s177 = sld [smem:[#allocation4 + $0xd]]
    %s178 = smul.u32 %s177, 4
    %s179 = scalar_lea.vmem [#allocation5], %s178
    %v180 = vld [vmem:[%s179] sm:$0xf]
    %s181 = scalar_lea.vmem %s174, 1 [#allocation2]
    %182 = vst.msk [vmem:[%s181] ss:$8 sm:$0xf] %vm104, %v180
    %183 = vst.msk [vmem:[%s181] ss:$8 sm:$0x0] %vm104, %v180
    %s184 = sld [smem:[#allocation4 + $0x6]]
    %s185 = smul.u32 %s184, 4
    %s186 = scalar_lea.vmem [#allocation5], %s185
    %v187 = vld [vmem:[%s186] sm:$0xf]
    %s188 = scalar_lea.vmem [#allocation2], 192
    %189 = vst.msk [vmem:[%s188] ss:$8 sm:$0xf] %vm104, %v187
    %190 = vst.msk [vmem:[%s188] ss:$8 sm:$0x0] %vm104, %v187
    %s191 = sld [smem:[#allocation4 + $0xe]]
    %s192 = smul.u32 %s191, 4
    %s193 = scalar_lea.vmem [#allocation5], %s192
    %v194 = vld [vmem:[%s193] sm:$0xf]
    %s195 = scalar_lea.vmem %s188, 1 [#allocation2]
    %196 = vst.msk [vmem:[%s195] ss:$8 sm:$0xf] %vm104, %v194
    %197 = vst.msk [vmem:[%s195] ss:$8 sm:$0x0] %vm104, %v194
    %s198 = sld [smem:[#allocation4 + $0x7]]
    %s199 = smul.u32 %s198, 4
    %s200 = scalar_lea.vmem [#allocation5], %s199
    %v201 = vld [vmem:[%s200] sm:$0xf]
    %s202 = scalar_lea.vmem [#allocation2], 224
    %203 = vst.msk [vmem:[%s202] ss:$8 sm:$0xf] %vm104, %v201
    %204 = vst.msk [vmem:[%s202] ss:$8 sm:$0x0] %vm104, %v201
    %s205 = sld [smem:[#allocation4 + $0xf]]
    %s206 = smul.u32 %s205, 4
    %s207 = scalar_lea.vmem [#allocation5], %s206
    %v208 = vld [vmem:[%s207] sm:$0xf]
    %s209 = scalar_lea.vmem %s202, 1 [#allocation2]
    %210 = vst.msk [vmem:[%s209] ss:$8 sm:$0xf] %vm104, %v208
    %211 = vst.msk [vmem:[%s209] ss:$8 sm:$0x0] %vm104, %v208
    %v212 = vld [vmem:[#allocation2] sm:$0xff]
    %v213 = vld [vmem:[#allocation2 + $0x8] sm:$0xff]
    %v214 = vld [vmem:[#allocation2 + $0x10] sm:$0xff]
    %v215 = vld [vmem:[#allocation2 + $0x18] sm:$0xff]
    %v216 = vld [vmem:[#allocation7] sm:$0xff]
    %v217 = vld [vmem:[#allocation7 + $0x8] sm:$0xff]
    %v218 = vld [vmem:[#allocation7 + $0x10] sm:$0xff]
    %v219 = vld [vmem:[#allocation7 + $0x18] sm:$0xff]
    %v220 = vld [vmem:[#allocation7 + $0x20] sm:$0xff]
    %v221 = vld [vmem:[#allocation7 + $0x28] sm:$0xff]
    %v222 = vld [vmem:[#allocation7 + $0x30] sm:$0xff]
    %v223 = vld [vmem:[#allocation7 + $0x38] sm:$0xff]
    %v224 = vld [vmem:[#allocation7 + $0x40] sm:$0xff]
    %v225 = vld [vmem:[#allocation7 + $0x48] sm:$0xff]
    %v226 = vld [vmem:[#allocation7 + $0x50] sm:$0xff]
    %v227 = vld [vmem:[#allocation7 + $0x58] sm:$0xff]
    %v228 = vld [vmem:[#allocation7 + $0x60] sm:$0xff]
    %v229 = vld [vmem:[#allocation7 + $0x68] sm:$0xff]
    %v230 = vld [vmem:[#allocation7 + $0x70] sm:$0xff]
    %v231 = vld [vmem:[#allocation7 + $0x78] sm:$0xff]
    %v232 = vld [vmem:[#allocation7 + $0x80] sm:$0xff]
    %v233 = vld [vmem:[#allocation7 + $0x88] sm:$0xff]
    %v234 = vld [vmem:[#allocation7 + $0x90] sm:$0xff]
    %v235 = vld [vmem:[#allocation7 + $0x98] sm:$0xff]
    %v236 = vld [vmem:[#allocation7 + $0xa0] sm:$0xff]
    %v237 = vld [vmem:[#allocation7 + $0xa8] sm:$0xff]
    %v238 = vld [vmem:[#allocation7 + $0xb0] sm:$0xff]
    %v239 = vld [vmem:[#allocation7 + $0xb8] sm:$0xff]
    %v240 = vld [vmem:[#allocation7 + $0xc0] sm:$0xff]
    %v241 = vld [vmem:[#allocation7 + $0xc8] sm:$0xff]
    %v242 = vld [vmem:[#allocation7 + $0xd0] sm:$0xff]
    %v243 = vld [vmem:[#allocation7 + $0xd8] sm:$0xff]
    %v244 = vld [vmem:[#allocation7 + $0xe0] sm:$0xff]
    %v245 = vld [vmem:[#allocation7 + $0xe8] sm:$0xff]
    %v246 = vld [vmem:[#allocation7 + $0xf0] sm:$0xff]
    %v247 = vld [vmem:[#allocation7 + $0xf8] sm:$0xff]
    %v248 = vld [vmem:[#allocation7 + $0x100] sm:$0xff]
    %v249 = vld [vmem:[#allocation7 + $0x108] sm:$0xff]
    %v250 = vld [vmem:[#allocation7 + $0x110] sm:$0xff]
    %v251 = vld [vmem:[#allocation7 + $0x118] sm:$0xff]
    %v252 = vld [vmem:[#allocation7 + $0x120] sm:$0xff]
    %v253 = vld [vmem:[#allocation7 + $0x128] sm:$0xff]
    %v254 = vld [vmem:[#allocation7 + $0x130] sm:$0xff]
    %v255 = vld [vmem:[#allocation7 + $0x138] sm:$0xff]
    %v256 = vld [vmem:[#allocation7 + $0x140] sm:$0xff]
    %v257 = vld [vmem:[#allocation7 + $0x148] sm:$0xff]
    %v258 = vld [vmem:[#allocation7 + $0x150] sm:$0xff]
    %v259 = vld [vmem:[#allocation7 + $0x158] sm:$0xff]
    %v260 = vld [vmem:[#allocation7 + $0x160] sm:$0xff]
    %v261 = vld [vmem:[#allocation7 + $0x168] sm:$0xff]
    %v262 = vld [vmem:[#allocation7 + $0x170] sm:$0xff]
    %v263 = vld [vmem:[#allocation7 + $0x178] sm:$0xff]
    %v264 = vld [vmem:[#allocation7 + $0x180] sm:$0xff]
    %v265 = vld [vmem:[#allocation7 + $0x188] sm:$0xff]
    %v266 = vld [vmem:[#allocation7 + $0x190] sm:$0xff]
    %v267 = vld [vmem:[#allocation7 + $0x198] sm:$0xff]
    %v268 = vld [vmem:[#allocation7 + $0x1a0] sm:$0xff]
    %v269 = vld [vmem:[#allocation7 + $0x1a8] sm:$0xff]
    %v270 = vld [vmem:[#allocation7 + $0x1b0] sm:$0xff]
    %v271 = vld [vmem:[#allocation7 + $0x1b8] sm:$0xff]
    %v272 = vld [vmem:[#allocation7 + $0x1c0] sm:$0xff]
    %v273 = vld [vmem:[#allocation7 + $0x1c8] sm:$0xff]
    %v274 = vld [vmem:[#allocation7 + $0x1d0] sm:$0xff]
    %v275 = vld [vmem:[#allocation7 + $0x1d8] sm:$0xff]
    %v276 = vld [vmem:[#allocation7 + $0x1e0] sm:$0xff]
    %v277 = vld [vmem:[#allocation7 + $0x1e8] sm:$0xff]
    %v278 = vld [vmem:[#allocation7 + $0x1f0] sm:$0xff]
    %v279 = vld [vmem:[#allocation7 + $0x1f8] sm:$0xff]
    %280 = vmatprep.subr.mxu0 %v277
    %281 = vmatpush1.msra.mxu0 %v276
    %282 = vmatprep.subr.mxu0 %v273
    %283 = vmatpush1.msra.mxu0 %v272
    %284 = vmatprep.subr.mxu0 %v269
    %285 = vmatpush1.msra.mxu0 %v268
    %286 = vmatprep.subr.mxu0 %v265
    %287 = vmatpush1.msra.mxu0 %v264
    %288 = vmatprep.subr.mxu0 %v261
    %289 = vmatpush1.msra.mxu0 %v260
    %290 = vmatprep.subr.mxu0 %v257
    %291 = vmatpush1.msra.mxu0 %v256
    %292 = vmatprep.subr.mxu0 %v253
    %293 = vmatpush1.msra.mxu0 %v252
    %294 = vmatprep.subr.mxu0 %v249
    %295 = vmatpush1.msra.mxu0 %v248
    %296 = vmatprep.subr.mxu0 %v245
    %297 = vmatpush1.msra.mxu0 %v244
    %298 = vmatprep.subr.mxu0 %v241
    %299 = vmatpush1.msra.mxu0 %v240
    %300 = vmatprep.subr.mxu0 %v237
    %301 = vmatpush1.msra.mxu0 %v236
    %302 = vmatprep.subr.mxu0 %v233
    %303 = vmatpush1.msra.mxu0 %v232
    %304 = vmatprep.subr.mxu0 %v229
    %305 = vmatpush1.msra.mxu0 %v228
    %306 = vmatprep.subr.mxu0 %v225
    %307 = vmatpush1.msra.mxu0 %v224
    %308 = vmatprep.subr.mxu0 %v221
    %309 = vmatpush1.msra.mxu0 %v220
    %310 = vmatprep.subr.mxu0 %v217
    %311 = vmatpush1.msra.mxu0 %v216
    %312 = vmatprep.subr.mxu0 0.0
    %313 = vmatpush2.msra.mxu0 0.0
    %314 = vmatprep.subr.mxu0 0.0
    %315 = vmatpush2.msra.mxu0 0.0
    %316 = vmatprep.subr.mxu0 0.0
    %317 = vmatpush2.msra.mxu0 0.0
    %318 = vmatprep.subr.mxu0 0.0
    %319 = vmatpush2.msra.mxu0 0.0
    %320 = vmatprep.subr.mxu0 0.0
    %321 = vmatpush2.msra.mxu0 0.0
    %322 = vmatprep.subr.mxu0 0.0
    %323 = vmatpush2.msra.mxu0 0.0
    %324 = vmatprep.subr.mxu0 0.0
    %325 = vmatpush2.msra.mxu0 0.0
    %326 = vmatprep.subr.mxu0 0.0
    %327 = vmatpush2.msra.mxu0 0.0
    %328 = vmatprep.subr.mxu0 0.0
    %329 = vmatpush2.msra.mxu0 0.0
    %330 = vmatprep.subr.mxu0 0.0
    %331 = vmatpush2.msra.mxu0 0.0
    %332 = vmatprep.subr.mxu0 0.0
    %333 = vmatpush2.msra.mxu0 0.0
    %334 = vmatprep.subr.mxu0 0.0
    %335 = vmatpush2.msra.mxu0 0.0
    %336 = vmatprep.subr.mxu0 0.0
    %337 = vmatpush2.msra.mxu0 0.0
    %338 = vmatprep.subr.mxu0 0.0
    %339 = vmatpush2.msra.mxu0 0.0
    %340 = vmatprep.subr.mxu0 0.0
    %341 = vmatpush2.msra.mxu0 0.0
    %342 = vmatprep.subr.mxu0 0.0
    %343 = vmatpush2.msra.mxu0 0.0
    %344 = vmatprep.mubr.f32.mxu0 0.0
    %345 = vmatmul.mubr.f32.gmra.mxu0 0.0
    %v346 = vpop.f32.mrf.mxu0
    %v347 = vadd.f32 0.0, %v346
    %v348 = vpop.f32.mrf.mxu0
    %v349 = vadd.f32 0.0, %v348
    %350 = vdwg.mxu0
    %351 = vmatprep.subr.mxu0 %v279
    %352 = vmatpush1.msra.mxu0 %v278
    %353 = vmatprep.subr.mxu0 %v275
    %354 = vmatpush1.msra.mxu0 %v274
    %355 = vmatprep.subr.mxu0 %v271
    %356 = vmatpush1.msra.mxu0 %v270
    %357 = vmatprep.subr.mxu0 %v267
    %358 = vmatpush1.msra.mxu0 %v266
    %359 = vmatprep.subr.mxu0 %v263
    %360 = vmatpush1.msra.mxu0 %v262
    %361 = vmatprep.subr.mxu0 %v259
    %362 = vmatpush1.msra.mxu0 %v258
    %363 = vmatprep.subr.mxu0 %v255
    %364 = vmatpush1.msra.mxu0 %v254
    %365 = vmatprep.subr.mxu0 %v251
    %366 = vmatpush1.msra.mxu0 %v250
    %367 = vmatprep.subr.mxu0 %v247
    %368 = vmatpush1.msra.mxu0 %v246
    %369 = vmatprep.subr.mxu0 %v243
    %370 = vmatpush1.msra.mxu0 %v242
    %371 = vmatprep.subr.mxu0 %v239
    %372 = vmatpush1.msra.mxu0 %v238
    %373 = vmatprep.subr.mxu0 %v235
    %374 = vmatpush1.msra.mxu0 %v234
    %375 = vmatprep.subr.mxu0 %v231
    %376 = vmatpush1.msra.mxu0 %v230
    %377 = vmatprep.subr.mxu0 %v227
    %378 = vmatpush1.msra.mxu0 %v226
    %379 = vmatprep.subr.mxu0 %v223
    %380 = vmatpush1.msra.mxu0 %v222
    %381 = vmatprep.subr.mxu0 %v219
    %382 = vmatpush1.msra.mxu0 %v218
    %383 = vmatprep.subr.mxu0 0.0
    %384 = vmatpush2.msra.mxu0 0.0
    %385 = vmatprep.subr.mxu0 0.0
    %386 = vmatpush2.msra.mxu0 0.0
    %387 = vmatprep.subr.mxu0 0.0
    %388 = vmatpush2.msra.mxu0 0.0
    %389 = vmatprep.subr.mxu0 0.0
    %390 = vmatpush2.msra.mxu0 0.0
    %391 = vmatprep.subr.mxu0 0.0
    %392 = vmatpush2.msra.mxu0 0.0
    %393 = vmatprep.subr.mxu0 0.0
    %394 = vmatpush2.msra.mxu0 0.0
    %395 = vmatprep.subr.mxu0 0.0
    %396 = vmatpush2.msra.mxu0 0.0
    %397 = vmatprep.subr.mxu0 0.0
    %398 = vmatpush2.msra.mxu0 0.0
    %399 = vmatprep.subr.mxu0 0.0
    %400 = vmatpush2.msra.mxu0 0.0
    %401 = vmatprep.subr.mxu0 0.0
    %402 = vmatpush2.msra.mxu0 0.0
    %403 = vmatprep.subr.mxu0 0.0
    %404 = vmatpush2.msra.mxu0 0.0
    %405 = vmatprep.subr.mxu0 0.0
    %406 = vmatpush2.msra.mxu0 0.0
    %407 = vmatprep.subr.mxu0 0.0
    %408 = vmatpush2.msra.mxu0 0.0
    %409 = vmatprep.subr.mxu0 0.0
    %410 = vmatpush2.msra.mxu0 0.0
    %411 = vmatprep.subr.mxu0 0.0
    %412 = vmatpush2.msra.mxu0 0.0
    %413 = vmatprep.subr.mxu0 0.0
    %414 = vmatpush2.msra.mxu0 0.0
    %415 = vmatprep.mubr.f32.mxu0 0.0
    %416 = vmatmul.mubr.f32.gmra.mxu0 0.0
    %v417 = vpop.f32.mrf.mxu0
    %v418 = vadd.f32 0.0, %v417
    %v419 = vpop.f32.mrf.mxu0
    %v420 = vadd.f32 0.0, %v419
    %421 = vdwg.mxu0
    %v422 = vadd.f32 %v212, %v347
    %v423 = vadd.f32 %v213, %v349
    %v424 = vadd.f32 %v214, %v418
    %v425 = vadd.f32 %v215, %v420
    %v426 = vtanh.pop %v422
    %v427 = vtanh.pop %v423
    %v428 = vtanh.pop %v424
    %v429 = vtanh.pop %v425
    %v430 = vmul.f32 %v426, 0.5
    %v431 = vadd.f32 %v430, 0.5
    %v432 = vmul.f32 %v427, 0.5
    %v433 = vadd.f32 %v432, 0.5
    %v434 = vmul.f32 %v429, 0.5
    %v435 = vadd.f32 %v434, 0.5
    %v436 = vmul.f32 %v433, 0.0
    %v437 = vmul.f32 %v431, %v428
    %v438 = vadd.f32 %v436, %v437
    %v439 = vtanh.pop %v438
    %v440 = vmul.f32 %v435, %v439
    %v441 = vld [vmem:[%s118] sm:$0xff]
    %v442 = vld [vmem:[%s118 + $0x8] sm:$0xff]
    %v443 = vld [vmem:[%s118 + $0x10] sm:$0xff]
    %v444 = vld [vmem:[%s118 + $0x18] sm:$0xff]
    %445 = vmatprep.subr.mxu0 %v277
    %446 = vmatpush1.msra.mxu0 %v276
    %447 = vmatprep.subr.mxu0 %v273
    %448 = vmatpush1.msra.mxu0 %v272
    %449 = vmatprep.subr.mxu0 %v269
    %450 = vmatpush1.msra.mxu0 %v268
    %451 = vmatprep.subr.mxu0 %v265
    %452 = vmatpush1.msra.mxu0 %v264
    %453 = vmatprep.subr.mxu0 %v261
    %454 = vmatpush1.msra.mxu0 %v260
    %455 = vmatprep.subr.mxu0 %v257
    %456 = vmatpush1.msra.mxu0 %v256
    %457 = vmatprep.subr.mxu0 %v253
    %458 = vmatpush1.msra.mxu0 %v252
    %459 = vmatprep.subr.mxu0 %v249
    %460 = vmatpush1.msra.mxu0 %v248
    %461 = vmatprep.subr.mxu0 %v245
    %462 = vmatpush1.msra.mxu0 %v244
    %463 = vmatprep.subr.mxu0 %v241
    %464 = vmatpush1.msra.mxu0 %v240
    %465 = vmatprep.subr.mxu0 %v237
    %466 = vmatpush1.msra.mxu0 %v236
    %467 = vmatprep.subr.mxu0 %v233
    %468 = vmatpush1.msra.mxu0 %v232
    %469 = vmatprep.subr.mxu0 %v229
    %470 = vmatpush1.msra.mxu0 %v228
    %471 = vmatprep.subr.mxu0 %v225
    %472 = vmatpush1.msra.mxu0 %v224
    %473 = vmatprep.subr.mxu0 %v221
    %474 = vmatpush1.msra.mxu0 %v220
    %475 = vmatprep.subr.mxu0 %v217
    %476 = vmatpush1.msra.mxu0 %v216
    %477 = vmatprep.subr.mxu0 0.0
    %478 = vmatpush2.msra.mxu0 0.0
    %479 = vmatprep.subr.mxu0 0.0
    %480 = vmatpush2.msra.mxu0 0.0
    %481 = vmatprep.subr.mxu0 0.0
    %482 = vmatpush2.msra.mxu0 0.0
    %483 = vmatprep.subr.mxu0 0.0
    %484 = vmatpush2.msra.mxu0 0.0
    %485 = vmatprep.subr.mxu0 0.0
    %486 = vmatpush2.msra.mxu0 0.0
    %487 = vmatprep.subr.mxu0 0.0
    %488 = vmatpush2.msra.mxu0 0.0
    %489 = vmatprep.subr.mxu0 0.0
    %490 = vmatpush2.msra.mxu0 0.0
    %491 = vmatprep.subr.mxu0 0.0
    %492 = vmatpush2.msra.mxu0 0.0
    %493 = vmatprep.subr.mxu0 0.0
    %494 = vmatpush2.msra.mxu0 0.0
    %495 = vmatprep.subr.mxu0 0.0
    %496 = vmatpush2.msra.mxu0 0.0
    %497 = vmatprep.subr.mxu0 0.0
    %498 = vmatpush2.msra.mxu0 0.0
    %499 = vmatprep.subr.mxu0 0.0
    %500 = vmatpush2.msra.mxu0 0.0
    %501 = vmatprep.subr.mxu0 0.0
    %502 = vmatpush2.msra.mxu0 0.0
    %503 = vmatprep.subr.mxu0 0.0
    %504 = vmatpush2.msra.mxu0 0.0
    %505 = vmatprep.subr.mxu0 0.0
    %506 = vmatpush2.msra.mxu0 0.0
    %507 = vmatprep.subr.mxu0 0.0
    %508 = vmatpush2.msra.mxu0 0.0
    %509 = vmatprep.mubr.f32.mxu0 0.0
    %510 = vmatmul.mubr.f32.gmra.mxu0 %v440
    %v511 = vpop.f32.mrf.mxu0
    %v512 = vadd.f32 0.0, %v511
    %v513 = vpop.f32.mrf.mxu0
    %v514 = vadd.f32 0.0, %v513
    %515 = vdwg.mxu0
    %516 = vmatprep.subr.mxu0 %v279
    %517 = vmatpush1.msra.mxu0 %v278
    %518 = vmatprep.subr.mxu0 %v275
    %519 = vmatpush1.msra.mxu0 %v274
    %520 = vmatprep.subr.mxu0 %v271
    %521 = vmatpush1.msra.mxu0 %v270
    %522 = vmatprep.subr.mxu0 %v267
    %523 = vmatpush1.msra.mxu0 %v266
    %524 = vmatprep.subr.mxu0 %v263
    %525 = vmatpush1.msra.mxu0 %v262
    %526 = vmatprep.subr.mxu0 %v259
    %527 = vmatpush1.msra.mxu0 %v258
    %528 = vmatprep.subr.mxu0 %v255
    %529 = vmatpush1.msra.mxu0 %v254
    %530 = vmatprep.subr.mxu0 %v251
    %531 = vmatpush1.msra.mxu0 %v250
    %532 = vmatprep.subr.mxu0 %v247
    %533 = vmatpush1.msra.mxu0 %v246
    %534 = vmatprep.subr.mxu0 %v243
    %535 = vmatpush1.msra.mxu0 %v242
    %536 = vmatprep.subr.mxu0 %v239
    %537 = vmatpush1.msra.mxu0 %v238
    %538 = vmatprep.subr.mxu0 %v235
    %539 = vmatpush1.msra.mxu0 %v234
    %540 = vmatprep.subr.mxu0 %v231
    %541 = vmatpush1.msra.mxu0 %v230
    %542 = vmatprep.subr.mxu0 %v227
    %543 = vmatpush1.msra.mxu0 %v226
    %544 = vmatprep.subr.mxu0 %v223
    %545 = vmatpush1.msra.mxu0 %v222
    %546 = vmatprep.subr.mxu0 %v219
    %547 = vmatpush1.msra.mxu0 %v218
    %548 = vmatprep.subr.mxu0 0.0
    %549 = vmatpush2.msra.mxu0 0.0
    %550 = vmatprep.subr.mxu0 0.0
    %551 = vmatpush2.msra.mxu0 0.0
    %552 = vmatprep.subr.mxu0 0.0
    %553 = vmatpush2.msra.mxu0 0.0
    %554 = vmatprep.subr.mxu0 0.0
    %555 = vmatpush2.msra.mxu0 0.0
    %556 = vmatprep.subr.mxu0 0.0
    %557 = vmatpush2.msra.mxu0 0.0
    %558 = vmatprep.subr.mxu0 0.0
    %559 = vmatpush2.msra.mxu0 0.0
    %560 = vmatprep.subr.mxu0 0.0
    %561 = vmatpush2.msra.mxu0 0.0
    %562 = vmatprep.subr.mxu0 0.0
    %563 = vmatpush2.msra.mxu0 0.0
    %564 = vmatprep.subr.mxu0 0.0
    %565 = vmatpush2.msra.mxu0 0.0
    %566 = vmatprep.subr.mxu0 0.0
    %567 = vmatpush2.msra.mxu0 0.0
    %568 = vmatprep.subr.mxu0 0.0
    %569 = vmatpush2.msra.mxu0 0.0
    %570 = vmatprep.subr.mxu0 0.0
    %571 = vmatpush2.msra.mxu0 0.0
    %572 = vmatprep.subr.mxu0 0.0
    %573 = vmatpush2.msra.mxu0 0.0
    %574 = vmatprep.subr.mxu0 0.0
    %575 = vmatpush2.msra.mxu0 0.0
    %576 = vmatprep.subr.mxu0 0.0
    %577 = vmatpush2.msra.mxu0 0.0
    %578 = vmatprep.subr.mxu0 0.0
    %579 = vmatpush2.msra.mxu0 0.0
    %580 = vmatprep.mubr.f32.mxu0 0.0
    %581 = vmatmul.mubr.f32.gmra.mxu0 %v440
    %v582 = vpop.f32.mrf.mxu0
    %v583 = vadd.f32 0.0, %v582
    %v584 = vpop.f32.mrf.mxu0
    %v585 = vadd.f32 0.0, %v584
    %586 = vdwg.mxu0
    %v587 = vadd.f32 %v441, %v512
    %v588 = vadd.f32 %v442, %v514
    %v589 = vadd.f32 %v443, %v583
    %v590 = vadd.f32 %v444, %v585
    %v591 = vtanh.pop %v587
    %v592 = vtanh.pop %v588
    %v593 = vtanh.pop %v589
    %v594 = vtanh.pop %v590
    %v595 = vmul.f32 %v591, 0.5
    %v596 = vadd.f32 %v595, 0.5
    %v597 = vmul.f32 %v592, 0.5
    %v598 = vadd.f32 %v597, 0.5
    %v599 = vmul.f32 %v594, 0.5
    %v600 = vadd.f32 %v599, 0.5
    %v601 = vmul.f32 %v598, %v438
    %v602 = vmul.f32 %v596, %v593
    %v603 = vadd.f32 %v601, %v602
    %v604 = vtanh.pop %v603
    %v605 = vmul.f32 %v600, %v604
    %v606 = vld [vmem:[%s132] sm:$0xff]
    %v607 = vld [vmem:[%s132 + $0x8] sm:$0xff]
    %v608 = vld [vmem:[%s132 + $0x10] sm:$0xff]
    %v609 = vld [vmem:[%s132 + $0x18] sm:$0xff]
    %610 = vmatprep.subr.mxu0 %v277
    %611 = vmatpush1.msra.mxu0 %v276
    %612 = vmatprep.subr.mxu0 %v273
    %613 = vmatpush1.msra.mxu0 %v272
    %614 = vmatprep.subr.mxu0 %v269
    %615 = vmatpush1.msra.mxu0 %v268
    %616 = vmatprep.subr.mxu0 %v265
    %617 = vmatpush1.msra.mxu0 %v264
    %618 = vmatprep.subr.mxu0 %v261
    %619 = vmatpush1.msra.mxu0 %v260
    %620 = vmatprep.subr.mxu0 %v257
    %621 = vmatpush1.msra.mxu0 %v256
    %622 = vmatprep.subr.mxu0 %v253
    %623 = vmatpush1.msra.mxu0 %v252
    %624 = vmatprep.subr.mxu0 %v249
    %625 = vmatpush1.msra.mxu0 %v248
    %626 = vmatprep.subr.mxu0 %v245
    %627 = vmatpush1.msra.mxu0 %v244
    %628 = vmatprep.subr.mxu0 %v241
    %629 = vmatpush1.msra.mxu0 %v240
    %630 = vmatprep.subr.mxu0 %v237
    %631 = vmatpush1.msra.mxu0 %v236
    %632 = vmatprep.subr.mxu0 %v233
    %633 = vmatpush1.msra.mxu0 %v232
    %634 = vmatprep.subr.mxu0 %v229
    %635 = vmatpush1.msra.mxu0 %v228
    %636 = vmatprep.subr.mxu0 %v225
    %637 = vmatpush1.msra.mxu0 %v224
    %638 = vmatprep.subr.mxu0 %v221
    %639 = vmatpush1.msra.mxu0 %v220
    %640 = vmatprep.subr.mxu0 %v217
    %641 = vmatpush1.msra.mxu0 %v216
    %642 = vmatprep.subr.mxu0 0.0
    %643 = vmatpush2.msra.mxu0 0.0
    %644 = vmatprep.subr.mxu0 0.0
    %645 = vmatpush2.msra.mxu0 0.0
    %646 = vmatprep.subr.mxu0 0.0
    %647 = vmatpush2.msra.mxu0 0.0
    %648 = vmatprep.subr.mxu0 0.0
    %649 = vmatpush2.msra.mxu0 0.0
    %650 = vmatprep.subr.mxu0 0.0
    %651 = vmatpush2.msra.mxu0 0.0
    %652 = vmatprep.subr.mxu0 0.0
    %653 = vmatpush2.msra.mxu0 0.0
    %654 = vmatprep.subr.mxu0 0.0
    %655 = vmatpush2.msra.mxu0 0.0
    %656 = vmatprep.subr.mxu0 0.0
    %657 = vmatpush2.msra.mxu0 0.0
    %658 = vmatprep.subr.mxu0 0.0
    %659 = vmatpush2.msra.mxu0 0.0
    %660 = vmatprep.subr.mxu0 0.0
    %661 = vmatpush2.msra.mxu0 0.0
    %662 = vmatprep.subr.mxu0 0.0
    %663 = vmatpush2.msra.mxu0 0.0
    %664 = vmatprep.subr.mxu0 0.0
    %665 = vmatpush2.msra.mxu0 0.0
    %666 = vmatprep.subr.mxu0 0.0
    %667 = vmatpush2.msra.mxu0 0.0
    %668 = vmatprep.subr.mxu0 0.0
    %669 = vmatpush2.msra.mxu0 0.0
    %670 = vmatprep.subr.mxu0 0.0
    %671 = vmatpush2.msra.mxu0 0.0
    %672 = vmatprep.subr.mxu0 0.0
    %673 = vmatpush2.msra.mxu0 0.0
    %674 = vmatprep.mubr.f32.mxu0 0.0
    %675 = vmatmul.mubr.f32.gmra.mxu0 %v605
    %v676 = vpop.f32.mrf.mxu0
    %v677 = vadd.f32 0.0, %v676
    %v678 = vpop.f32.mrf.mxu0
    %v679 = vadd.f32 0.0, %v678
    %680 = vdwg.mxu0
    %681 = vmatprep.subr.mxu0 %v279
    %682 = vmatpush1.msra.mxu0 %v278
    %683 = vmatprep.subr.mxu0 %v275
    %684 = vmatpush1.msra.mxu0 %v274
    %685 = vmatprep.subr.mxu0 %v271
    %686 = vmatpush1.msra.mxu0 %v270
    %687 = vmatprep.subr.mxu0 %v267
    %688 = vmatpush1.msra.mxu0 %v266
    %689 = vmatprep.subr.mxu0 %v263
    %690 = vmatpush1.msra.mxu0 %v262
    %691 = vmatprep.subr.mxu0 %v259
    %692 = vmatpush1.msra.mxu0 %v258
    %693 = vmatprep.subr.mxu0 %v255
    %694 = vmatpush1.msra.mxu0 %v254
    %695 = vmatprep.subr.mxu0 %v251
    %696 = vmatpush1.msra.mxu0 %v250
    %697 = vmatprep.subr.mxu0 %v247
    %698 = vmatpush1.msra.mxu0 %v246
    %699 = vmatprep.subr.mxu0 %v243
    %700 = vmatpush1.msra.mxu0 %v242
    %701 = vmatprep.subr.mxu0 %v239
    %702 = vmatpush1.msra.mxu0 %v238
    %703 = vmatprep.subr.mxu0 %v235
    %704 = vmatpush1.msra.mxu0 %v234
    %705 = vmatprep.subr.mxu0 %v231
    %706 = vmatpush1.msra.mxu0 %v230
    %707 = vmatprep.subr.mxu0 %v227
    %708 = vmatpush1.msra.mxu0 %v226
    %709 = vmatprep.subr.mxu0 %v223
    %710 = vmatpush1.msra.mxu0 %v222
    %711 = vmatprep.subr.mxu0 %v219
    %712 = vmatpush1.msra.mxu0 %v218
    %713 = vmatprep.subr.mxu0 0.0
    %714 = vmatpush2.msra.mxu0 0.0
    %715 = vmatprep.subr.mxu0 0.0
    %716 = vmatpush2.msra.mxu0 0.0
    %717 = vmatprep.subr.mxu0 0.0
    %718 = vmatpush2.msra.mxu0 0.0
    %719 = vmatprep.subr.mxu0 0.0
    %720 = vmatpush2.msra.mxu0 0.0
    %721 = vmatprep.subr.mxu0 0.0
    %722 = vmatpush2.msra.mxu0 0.0
    %723 = vmatprep.subr.mxu0 0.0
    %724 = vmatpush2.msra.mxu0 0.0
    %725 = vmatprep.subr.mxu0 0.0
    %726 = vmatpush2.msra.mxu0 0.0
    %727 = vmatprep.subr.mxu0 0.0
    %728 = vmatpush2.msra.mxu0 0.0
    %729 = vmatprep.subr.mxu0 0.0
    %730 = vmatpush2.msra.mxu0 0.0
    %731 = vmatprep.subr.mxu0 0.0
    %732 = vmatpush2.msra.mxu0 0.0
    %733 = vmatprep.subr.mxu0 0.0
    %734 = vmatpush2.msra.mxu0 0.0
    %735 = vmatprep.subr.mxu0 0.0
    %736 = vmatpush2.msra.mxu0 0.0
    %737 = vmatprep.subr.mxu0 0.0
    %738 = vmatpush2.msra.mxu0 0.0
    %739 = vmatprep.subr.mxu0 0.0
    %740 = vmatpush2.msra.mxu0 0.0
    %741 = vmatprep.subr.mxu0 0.0
    %742 = vmatpush2.msra.mxu0 0.0
    %743 = vmatprep.subr.mxu0 0.0
    %744 = vmatpush2.msra.mxu0 0.0
    %745 = vmatprep.mubr.f32.mxu0 0.0
    %746 = vmatmul.mubr.f32.gmra.mxu0 %v605
    %v747 = vpop.f32.mrf.mxu0
    %v748 = vadd.f32 0.0, %v747
    %v749 = vpop.f32.mrf.mxu0
    %v750 = vadd.f32 0.0, %v749
    %751 = vdwg.mxu0
    %v752 = vadd.f32 %v606, %v677
    %v753 = vadd.f32 %v607, %v679
    %v754 = vadd.f32 %v608, %v748
    %v755 = vadd.f32 %v609, %v750
    %v756 = vtanh.pop %v752
    %v757 = vtanh.pop %v753
    %v758 = vtanh.pop %v754
    %v759 = vtanh.pop %v755
    %v760 = vmul.f32 %v756, 0.5
    %v761 = vadd.f32 %v760, 0.5
    %v762 = vmul.f32 %v757, 0.5
    %v763 = vadd.f32 %v762, 0.5
    %v764 = vmul.f32 %v759, 0.5
    %v765 = vadd.f32 %v764, 0.5
    %v766 = vmul.f32 %v763, %v603
    %v767 = vmul.f32 %v761, %v758
    %v768 = vadd.f32 %v766, %v767
    %v769 = vtanh.pop %v768
    %v770 = vmul.f32 %v765, %v769
    %v771 = vld [vmem:[%s146] sm:$0xff]
    %v772 = vld [vmem:[%s146 + $0x8] sm:$0xff]
    %v773 = vld [vmem:[%s146 + $0x10] sm:$0xff]
    %v774 = vld [vmem:[%s146 + $0x18] sm:$0xff]
    %775 = vmatprep.subr.mxu0 %v277
    %776 = vmatpush1.msra.mxu0 %v276
    %777 = vmatprep.subr.mxu0 %v273
    %778 = vmatpush1.msra.mxu0 %v272
    %779 = vmatprep.subr.mxu0 %v269
    %780 = vmatpush1.msra.mxu0 %v268
    %781 = vmatprep.subr.mxu0 %v265
    %782 = vmatpush1.msra.mxu0 %v264
    %783 = vmatprep.subr.mxu0 %v261
    %784 = vmatpush1.msra.mxu0 %v260
    %785 = vmatprep.subr.mxu0 %v257
    %786 = vmatpush1.msra.mxu0 %v256
    %787 = vmatprep.subr.mxu0 %v253
    %788 = vmatpush1.msra.mxu0 %v252
    %789 = vmatprep.subr.mxu0 %v249
    %790 = vmatpush1.msra.mxu0 %v248
    %791 = vmatprep.subr.mxu0 %v245
    %792 = vmatpush1.msra.mxu0 %v244
    %793 = vmatprep.subr.mxu0 %v241
    %794 = vmatpush1.msra.mxu0 %v240
    %795 = vmatprep.subr.mxu0 %v237
    %796 = vmatpush1.msra.mxu0 %v236
    %797 = vmatprep.subr.mxu0 %v233
    %798 = vmatpush1.msra.mxu0 %v232
    %799 = vmatprep.subr.mxu0 %v229
    %800 = vmatpush1.msra.mxu0 %v228
    %801 = vmatprep.subr.mxu0 %v225
    %802 = vmatpush1.msra.mxu0 %v224
    %803 = vmatprep.subr.mxu0 %v221
    %804 = vmatpush1.msra.mxu0 %v220
    %805 = vmatprep.subr.mxu0 %v217
    %806 = vmatpush1.msra.mxu0 %v216
    %807 = vmatprep.subr.mxu0 0.0
    %808 = vmatpush2.msra.mxu0 0.0
    %809 = vmatprep.subr.mxu0 0.0
    %810 = vmatpush2.msra.mxu0 0.0
    %811 = vmatprep.subr.mxu0 0.0
    %812 = vmatpush2.msra.mxu0 0.0
    %813 = vmatprep.subr.mxu0 0.0
    %814 = vmatpush2.msra.mxu0 0.0
    %815 = vmatprep.subr.mxu0 0.0
    %816 = vmatpush2.msra.mxu0 0.0
    %817 = vmatprep.subr.mxu0 0.0
    %818 = vmatpush2.msra.mxu0 0.0
    %819 = vmatprep.subr.mxu0 0.0
    %820 = vmatpush2.msra.mxu0 0.0
    %821 = vmatprep.subr.mxu0 0.0
    %822 = vmatpush2.msra.mxu0 0.0
    %823 = vmatprep.subr.mxu0 0.0
    %824 = vmatpush2.msra.mxu0 0.0
    %825 = vmatprep.subr.mxu0 0.0
    %826 = vmatpush2.msra.mxu0 0.0
    %827 = vmatprep.subr.mxu0 0.0
    %828 = vmatpush2.msra.mxu0 0.0
    %829 = vmatprep.subr.mxu0 0.0
    %830 = vmatpush2.msra.mxu0 0.0
    %831 = vmatprep.subr.mxu0 0.0
    %832 = vmatpush2.msra.mxu0 0.0
    %833 = vmatprep.subr.mxu0 0.0
    %834 = vmatpush2.msra.mxu0 0.0
    %835 = vmatprep.subr.mxu0 0.0
    %836 = vmatpush2.msra.mxu0 0.0
    %837 = vmatprep.subr.mxu0 0.0
    %838 = vmatpush2.msra.mxu0 0.0
    %839 = vmatprep.mubr.f32.mxu0 0.0
    %840 = vmatmul.mubr.f32.gmra.mxu0 %v770
    %v841 = vpop.f32.mrf.mxu0
    %v842 = vadd.f32 0.0, %v841
    %v843 = vpop.f32.mrf.mxu0
    %v844 = vadd.f32 0.0, %v843
    %845 = vdwg.mxu0
    %846 = vmatprep.subr.mxu0 %v279
    %847 = vmatpush1.msra.mxu0 %v278
    %848 = vmatprep.subr.mxu0 %v275
    %849 = vmatpush1.msra.mxu0 %v274
    %850 = vmatprep.subr.mxu0 %v271
    %851 = vmatpush1.msra.mxu0 %v270
    %852 = vmatprep.subr.mxu0 %v267
    %853 = vmatpush1.msra.mxu0 %v266
    %854 = vmatprep.subr.mxu0 %v263
    %855 = vmatpush1.msra.mxu0 %v262
    %856 = vmatprep.subr.mxu0 %v259
    %857 = vmatpush1.msra.mxu0 %v258
    %858 = vmatprep.subr.mxu0 %v255
    %859 = vmatpush1.msra.mxu0 %v254
    %860 = vmatprep.subr.mxu0 %v251
    %861 = vmatpush1.msra.mxu0 %v250
    %862 = vmatprep.subr.mxu0 %v247
    %863 = vmatpush1.msra.mxu0 %v246
    %864 = vmatprep.subr.mxu0 %v243
    %865 = vmatpush1.msra.mxu0 %v242
    %866 = vmatprep.subr.mxu0 %v239
    %867 = vmatpush1.msra.mxu0 %v238
    %868 = vmatprep.subr.mxu0 %v235
    %869 = vmatpush1.msra.mxu0 %v234
    %870 = vmatprep.subr.mxu0 %v231
    %871 = vmatpush1.msra.mxu0 %v230
    %872 = vmatprep.subr.mxu0 %v227
    %873 = vmatpush1.msra.mxu0 %v226
    %874 = vmatprep.subr.mxu0 %v223
    %875 = vmatpush1.msra.mxu0 %v222
    %876 = vmatprep.subr.mxu0 %v219
    %877 = vmatpush1.msra.mxu0 %v218
    %878 = vmatprep.subr.mxu0 0.0
    %879 = vmatpush2.msra.mxu0 0.0
    %880 = vmatprep.subr.mxu0 0.0
    %881 = vmatpush2.msra.mxu0 0.0
    %882 = vmatprep.subr.mxu0 0.0
    %883 = vmatpush2.msra.mxu0 0.0
    %884 = vmatprep.subr.mxu0 0.0
    %885 = vmatpush2.msra.mxu0 0.0
    %886 = vmatprep.subr.mxu0 0.0
    %887 = vmatpush2.msra.mxu0 0.0
    %888 = vmatprep.subr.mxu0 0.0
    %889 = vmatpush2.msra.mxu0 0.0
    %890 = vmatprep.subr.mxu0 0.0
    %891 = vmatpush2.msra.mxu0 0.0
    %892 = vmatprep.subr.mxu0 0.0
    %893 = vmatpush2.msra.mxu0 0.0
    %894 = vmatprep.subr.mxu0 0.0
    %895 = vmatpush2.msra.mxu0 0.0
    %896 = vmatprep.subr.mxu0 0.0
    %897 = vmatpush2.msra.mxu0 0.0
    %898 = vmatprep.subr.mxu0 0.0
    %899 = vmatpush2.msra.mxu0 0.0
    %900 = vmatprep.subr.mxu0 0.0
    %901 = vmatpush2.msra.mxu0 0.0
    %902 = vmatprep.subr.mxu0 0.0
    %903 = vmatpush2.msra.mxu0 0.0
    %904 = vmatprep.subr.mxu0 0.0
    %905 = vmatpush2.msra.mxu0 0.0
    %906 = vmatprep.subr.mxu0 0.0
    %907 = vmatpush2.msra.mxu0 0.0
    %908 = vmatprep.subr.mxu0 0.0
    %909 = vmatpush2.msra.mxu0 0.0
    %910 = vmatprep.mubr.f32.mxu0 0.0
    %911 = vmatmul.mubr.f32.gmra.mxu0 %v770
    %v912 = vpop.f32.mrf.mxu0
    %v913 = vadd.f32 0.0, %v912
    %v914 = vpop.f32.mrf.mxu0
    %v915 = vadd.f32 0.0, %v914
    %916 = vdwg.mxu0
    %v917 = vadd.f32 %v771, %v842
    %v918 = vadd.f32 %v772, %v844
    %v919 = vadd.f32 %v773, %v913
    %v920 = vadd.f32 %v774, %v915
    %v921 = vtanh.pop %v917
    %v922 = vtanh.pop %v918
    %v923 = vtanh.pop %v919
    %v924 = vtanh.pop %v920
    %v925 = vmul.f32 %v921, 0.5
    %v926 = vadd.f32 %v925, 0.5
    %v927 = vmul.f32 %v922, 0.5
    %v928 = vadd.f32 %v927, 0.5
    %v929 = vmul.f32 %v924, 0.5
    %v930 = vadd.f32 %v929, 0.5
    %v931 = vmul.f32 %v928, %v768
    %v932 = vmul.f32 %v926, %v923
    %v933 = vadd.f32 %v931, %v932
    %v934 = vtanh.pop %v933
    %v935 = vmul.f32 %v930, %v934
    %v936 = vld [vmem:[%s160] sm:$0xff]
    %v937 = vld [vmem:[%s160 + $0x8] sm:$0xff]
    %v938 = vld [vmem:[%s160 + $0x10] sm:$0xff]
    %v939 = vld [vmem:[%s160 + $0x18] sm:$0xff]
    %940 = vmatprep.subr.mxu0 %v277
    %941 = vmatpush1.msra.mxu0 %v276
    %942 = vmatprep.subr.mxu0 %v273
    %943 = vmatpush1.msra.mxu0 %v272
    %944 = vmatprep.subr.mxu0 %v269
    %945 = vmatpush1.msra.mxu0 %v268
    %946 = vmatprep.subr.mxu0 %v265
    %947 = vmatpush1.msra.mxu0 %v264
    %948 = vmatprep.subr.mxu0 %v261
    %949 = vmatpush1.msra.mxu0 %v260
    %950 = vmatprep.subr.mxu0 %v257
    %951 = vmatpush1.msra.mxu0 %v256
    %952 = vmatprep.subr.mxu0 %v253
    %953 = vmatpush1.msra.mxu0 %v252
    %954 = vmatprep.subr.mxu0 %v249
    %955 = vmatpush1.msra.mxu0 %v248
    %956 = vmatprep.subr.mxu0 %v245
    %957 = vmatpush1.msra.mxu0 %v244
    %958 = vmatprep.subr.mxu0 %v241
    %959 = vmatpush1.msra.mxu0 %v240
    %960 = vmatprep.subr.mxu0 %v237
    %961 = vmatpush1.msra.mxu0 %v236
    %962 = vmatprep.subr.mxu0 %v233
    %963 = vmatpush1.msra.mxu0 %v232
    %964 = vmatprep.subr.mxu0 %v229
    %965 = vmatpush1.msra.mxu0 %v228
    %966 = vmatprep.subr.mxu0 %v225
    %967 = vmatpush1.msra.mxu0 %v224
    %968 = vmatprep.subr.mxu0 %v221
    %969 = vmatpush1.msra.mxu0 %v220
    %970 = vmatprep.subr.mxu0 %v217
    %971 = vmatpush1.msra.mxu0 %v216
    %972 = vmatprep.subr.mxu0 0.0
    %973 = vmatpush2.msra.mxu0 0.0
    %974 = vmatprep.subr.mxu0 0.0
    %975 = vmatpush2.msra.mxu0 0.0
    %976 = vmatprep.subr.mxu0 0.0
    %977 = vmatpush2.msra.mxu0 0.0
    %978 = vmatprep.subr.mxu0 0.0
    %979 = vmatpush2.msra.mxu0 0.0
    %980 = vmatprep.subr.mxu0 0.0
    %981 = vmatpush2.msra.mxu0 0.0
    %982 = vmatprep.subr.mxu0 0.0
    %983 = vmatpush2.msra.mxu0 0.0
    %984 = vmatprep.subr.mxu0 0.0
    %985 = vmatpush2.msra.mxu0 0.0
    %986 = vmatprep.subr.mxu0 0.0
    %987 = vmatpush2.msra.mxu0 0.0
    %988 = vmatprep.subr.mxu0 0.0
    %989 = vmatpush2.msra.mxu0 0.0
    %990 = vmatprep.subr.mxu0 0.0
    %991 = vmatpush2.msra.mxu0 0.0
    %992 = vmatprep.subr.mxu0 0.0
    %993 = vmatpush2.msra.mxu0 0.0
    %994 = vmatprep.subr.mxu0 0.0
    %995 = vmatpush2.msra.mxu0 0.0
    %996 = vmatprep.subr.mxu0 0.0
    %997 = vmatpush2.msra.mxu0 0.0
    %998 = vmatprep.subr.mxu0 0.0
    %999 = vmatpush2.msra.mxu0 0.0
    %1000 = vmatprep.subr.mxu0 0.0
    %1001 = vmatpush2.msra.mxu0 0.0
    %1002 = vmatprep.subr.mxu0 0.0
    %1003 = vmatpush2.msra.mxu0 0.0
    %1004 = vmatprep.mubr.f32.mxu0 0.0
    %1005 = vmatmul.mubr.f32.gmra.mxu0 %v935
    %v1006 = vpop.f32.mrf.mxu0
    %v1007 = vadd.f32 0.0, %v1006
    %v1008 = vpop.f32.mrf.mxu0
    %v1009 = vadd.f32 0.0, %v1008
    %1010 = vdwg.mxu0
    %1011 = vmatprep.subr.mxu0 %v279
    %1012 = vmatpush1.msra.mxu0 %v278
    %1013 = vmatprep.subr.mxu0 %v275
    %1014 = vmatpush1.msra.mxu0 %v274
    %1015 = vmatprep.subr.mxu0 %v271
    %1016 = vmatpush1.msra.mxu0 %v270
    %1017 = vmatprep.subr.mxu0 %v267
    %1018 = vmatpush1.msra.mxu0 %v266
    %1019 = vmatprep.subr.mxu0 %v263
    %1020 = vmatpush1.msra.mxu0 %v262
    %1021 = vmatprep.subr.mxu0 %v259
    %1022 = vmatpush1.msra.mxu0 %v258
    %1023 = vmatprep.subr.mxu0 %v255
    %1024 = vmatpush1.msra.mxu0 %v254
    %1025 = vmatprep.subr.mxu0 %v251
    %1026 = vmatpush1.msra.mxu0 %v250
    %1027 = vmatprep.subr.mxu0 %v247
    %1028 = vmatpush1.msra.mxu0 %v246
    %1029 = vmatprep.subr.mxu0 %v243
    %1030 = vmatpush1.msra.mxu0 %v242
    %1031 = vmatprep.subr.mxu0 %v239
    %1032 = vmatpush1.msra.mxu0 %v238
    %1033 = vmatprep.subr.mxu0 %v235
    %1034 = vmatpush1.msra.mxu0 %v234
    %1035 = vmatprep.subr.mxu0 %v231
    %1036 = vmatpush1.msra.mxu0 %v230
    %1037 = vmatprep.subr.mxu0 %v227
    %1038 = vmatpush1.msra.mxu0 %v226
    %1039 = vmatprep.subr.mxu0 %v223
    %1040 = vmatpush1.msra.mxu0 %v222
    %1041 = vmatprep.subr.mxu0 %v219
    %1042 = vmatpush1.msra.mxu0 %v218
    %1043 = vmatprep.subr.mxu0 0.0
    %1044 = vmatpush2.msra.mxu0 0.0
    %1045 = vmatprep.subr.mxu0 0.0
    %1046 = vmatpush2.msra.mxu0 0.0
    %1047 = vmatprep.subr.mxu0 0.0
    %1048 = vmatpush2.msra.mxu0 0.0
    %1049 = vmatprep.subr.mxu0 0.0
    %1050 = vmatpush2.msra.mxu0 0.0
    %1051 = vmatprep.subr.mxu0 0.0
    %1052 = vmatpush2.msra.mxu0 0.0
    %1053 = vmatprep.subr.mxu0 0.0
    %1054 = vmatpush2.msra.mxu0 0.0
    %1055 = vmatprep.subr.mxu0 0.0
    %1056 = vmatpush2.msra.mxu0 0.0
    %1057 = vmatprep.subr.mxu0 0.0
    %1058 = vmatpush2.msra.mxu0 0.0
    %1059 = vmatprep.subr.mxu0 0.0
    %1060 = vmatpush2.msra.mxu0 0.0
    %1061 = vmatprep.subr.mxu0 0.0
    %1062 = vmatpush2.msra.mxu0 0.0
    %1063 = vmatprep.subr.mxu0 0.0
    %1064 = vmatpush2.msra.mxu0 0.0
    %1065 = vmatprep.subr.mxu0 0.0
    %1066 = vmatpush2.msra.mxu0 0.0
    %1067 = vmatprep.subr.mxu0 0.0
    %1068 = vmatpush2.msra.mxu0 0.0
    %1069 = vmatprep.subr.mxu0 0.0
    %1070 = vmatpush2.msra.mxu0 0.0
    %1071 = vmatprep.subr.mxu0 0.0
    %1072 = vmatpush2.msra.mxu0 0.0
    %1073 = vmatprep.subr.mxu0 0.0
    %1074 = vmatpush2.msra.mxu0 0.0
    %1075 = vmatprep.mubr.f32.mxu0 0.0
    %1076 = vmatmul.mubr.f32.gmra.mxu0 %v935
    %v1077 = vpop.f32.mrf.mxu0
    %v1078 = vadd.f32 0.0, %v1077
    %v1079 = vpop.f32.mrf.mxu0
    %v1080 = vadd.f32 0.0, %v1079
    %1081 = vdwg.mxu0
    %v1082 = vadd.f32 %v936, %v1007
    %v1083 = vadd.f32 %v937, %v1009
    %v1084 = vadd.f32 %v938, %v1078
    %v1085 = vadd.f32 %v939, %v1080
    %v1086 = vtanh.pop %v1082
    %v1087 = vtanh.pop %v1083
    %v1088 = vtanh.pop %v1084
    %v1089 = vtanh.pop %v1085
    %v1090 = vmul.f32 %v1086, 0.5
    %v1091 = vadd.f32 %v1090, 0.5
    %v1092 = vmul.f32 %v1087, 0.5
    %v1093 = vadd.f32 %v1092, 0.5
    %v1094 = vmul.f32 %v1089, 0.5
    %v1095 = vadd.f32 %v1094, 0.5
    %v1096 = vmul.f32 %v1093, %v933
    %v1097 = vmul.f32 %v1091, %v1088
    %v1098 = vadd.f32 %v1096, %v1097
    %v1099 = vtanh.pop %v1098
    %v1100 = vmul.f32 %v1095, %v1099
    %v1101 = vld [vmem:[%s174] sm:$0xff]
    %v1102 = vld [vmem:[%s174 + $0x8] sm:$0xff]
    %v1103 = vld [vmem:[%s174 + $0x10] sm:$0xff]
    %v1104 = vld [vmem:[%s174 + $0x18] sm:$0xff]
    %1105 = vmatprep.subr.mxu0 %v277
    %1106 = vmatpush1.msra.mxu0 %v276
    %1107 = vmatprep.subr.mxu0 %v273
    %1108 = vmatpush1.msra.mxu0 %v272
    %1109 = vmatprep.subr.mxu0 %v269
    %1110 = vmatpush1.msra.mxu0 %v268
    %1111 = vmatprep.subr.mxu0 %v265
    %1112 = vmatpush1.msra.mxu0 %v264
    %1113 = vmatprep.subr.mxu0 %v261
    %1114 = vmatpush1.msra.mxu0 %v260
    %1115 = vmatprep.subr.mxu0 %v257
    %1116 = vmatpush1.msra.mxu0 %v256
    %1117 = vmatprep.subr.mxu0 %v253
    %1118 = vmatpush1.msra.mxu0 %v252
    %1119 = vmatprep.subr.mxu0 %v249
    %1120 = vmatpush1.msra.mxu0 %v248
    %1121 = vmatprep.subr.mxu0 %v245
    %1122 = vmatpush1.msra.mxu0 %v244
    %1123 = vmatprep.subr.mxu0 %v241
    %1124 = vmatpush1.msra.mxu0 %v240
    %1125 = vmatprep.subr.mxu0 %v237
    %1126 = vmatpush1.msra.mxu0 %v236
    %1127 = vmatprep.subr.mxu0 %v233
    %1128 = vmatpush1.msra.mxu0 %v232
    %1129 = vmatprep.subr.mxu0 %v229
    %1130 = vmatpush1.msra.mxu0 %v228
    %1131 = vmatprep.subr.mxu0 %v225
    %1132 = vmatpush1.msra.mxu0 %v224
    %1133 = vmatprep.subr.mxu0 %v221
    %1134 = vmatpush1.msra.mxu0 %v220
    %1135 = vmatprep.subr.mxu0 %v217
    %1136 = vmatpush1.msra.mxu0 %v216
    %1137 = vmatprep.subr.mxu0 0.0
    %1138 = vmatpush2.msra.mxu0 0.0
    %1139 = vmatprep.subr.mxu0 0.0
    %1140 = vmatpush2.msra.mxu0 0.0
    %1141 = vmatprep.subr.mxu0 0.0
    %1142 = vmatpush2.msra.mxu0 0.0
    %1143 = vmatprep.subr.mxu0 0.0
    %1144 = vmatpush2.msra.mxu0 0.0
    %1145 = vmatprep.subr.mxu0 0.0
    %1146 = vmatpush2.msra.mxu0 0.0
    %1147 = vmatprep.subr.mxu0 0.0
    %1148 = vmatpush2.msra.mxu0 0.0
    %1149 = vmatprep.subr.mxu0 0.0
    %1150 = vmatpush2.msra.mxu0 0.0
    %1151 = vmatprep.subr.mxu0 0.0
    %1152 = vmatpush2.msra.mxu0 0.0
    %1153 = vmatprep.subr.mxu0 0.0
    %1154 = vmatpush2.msra.mxu0 0.0
    %1155 = vmatprep.subr.mxu0 0.0
    %1156 = vmatpush2.msra.mxu0 0.0
    %1157 = vmatprep.subr.mxu0 0.0
    %1158 = vmatpush2.msra.mxu0 0.0
    %1159 = vmatprep.subr.mxu0 0.0
    %1160 = vmatpush2.msra.mxu0 0.0
    %1161 = vmatprep.subr.mxu0 0.0
    %1162 = vmatpush2.msra.mxu0 0.0
    %1163 = vmatprep.subr.mxu0 0.0
    %1164 = vmatpush2.msra.mxu0 0.0
    %1165 = vmatprep.subr.mxu0 0.0
    %1166 = vmatpush2.msra.mxu0 0.0
    %1167 = vmatprep.subr.mxu0 0.0
    %1168 = vmatpush2.msra.mxu0 0.0
    %1169 = vmatprep.mubr.f32.mxu0 0.0
    %1170 = vmatmul.mubr.f32.gmra.mxu0 %v1100
    %v1171 = vpop.f32.mrf.mxu0
    %v1172 = vadd.f32 0.0, %v1171
    %v1173 = vpop.f32.mrf.mxu0
    %v1174 = vadd.f32 0.0, %v1173
    %1175 = vdwg.mxu0
    %1176 = vmatprep.subr.mxu0 %v279
    %1177 = vmatpush1.msra.mxu0 %v278
    %1178 = vmatprep.subr.mxu0 %v275
    %1179 = vmatpush1.msra.mxu0 %v274
    %1180 = vmatprep.subr.mxu0 %v271
    %1181 = vmatpush1.msra.mxu0 %v270
    %1182 = vmatprep.subr.mxu0 %v267
    %1183 = vmatpush1.msra.mxu0 %v266
    %1184 = vmatprep.subr.mxu0 %v263
    %1185 = vmatpush1.msra.mxu0 %v262
    %1186 = vmatprep.subr.mxu0 %v259
    %1187 = vmatpush1.msra.mxu0 %v258
    %1188 = vmatprep.subr.mxu0 %v255
    %1189 = vmatpush1.msra.mxu0 %v254
    %1190 = vmatprep.subr.mxu0 %v251
    %1191 = vmatpush1.msra.mxu0 %v250
    %1192 = vmatprep.subr.mxu0 %v247
    %1193 = vmatpush1.msra.mxu0 %v246
    %1194 = vmatprep.subr.mxu0 %v243
    %1195 = vmatpush1.msra.mxu0 %v242
    %1196 = vmatprep.subr.mxu0 %v239
    %1197 = vmatpush1.msra.mxu0 %v238
    %1198 = vmatprep.subr.mxu0 %v235
    %1199 = vmatpush1.msra.mxu0 %v234
    %1200 = vmatprep.subr.mxu0 %v231
    %1201 = vmatpush1.msra.mxu0 %v230
    %1202 = vmatprep.subr.mxu0 %v227
    %1203 = vmatpush1.msra.mxu0 %v226
    %1204 = vmatprep.subr.mxu0 %v223
    %1205 = vmatpush1.msra.mxu0 %v222
    %1206 = vmatprep.subr.mxu0 %v219
    %1207 = vmatpush1.msra.mxu0 %v218
    %1208 = vmatprep.subr.mxu0 0.0
    %1209 = vmatpush2.msra.mxu0 0.0
    %1210 = vmatprep.subr.mxu0 0.0
    %1211 = vmatpush2.msra.mxu0 0.0
    %1212 = vmatprep.subr.mxu0 0.0
    %1213 = vmatpush2.msra.mxu0 0.0
    %1214 = vmatprep.subr.mxu0 0.0
    %1215 = vmatpush2.msra.mxu0 0.0
    %1216 = vmatprep.subr.mxu0 0.0
    %1217 = vmatpush2.msra.mxu0 0.0
    %1218 = vmatprep.subr.mxu0 0.0
    %1219 = vmatpush2.msra.mxu0 0.0
    %1220 = vmatprep.subr.mxu0 0.0
    %1221 = vmatpush2.msra.mxu0 0.0
    %1222 = vmatprep.subr.mxu0 0.0
    %1223 = vmatpush2.msra.mxu0 0.0
    %1224 = vmatprep.subr.mxu0 0.0
    %1225 = vmatpush2.msra.mxu0 0.0
    %1226 = vmatprep.subr.mxu0 0.0
    %1227 = vmatpush2.msra.mxu0 0.0
    %1228 = vmatprep.subr.mxu0 0.0
    %1229 = vmatpush2.msra.mxu0 0.0
    %1230 = vmatprep.subr.mxu0 0.0
    %1231 = vmatpush2.msra.mxu0 0.0
    %1232 = vmatprep.subr.mxu0 0.0
    %1233 = vmatpush2.msra.mxu0 0.0
    %1234 = vmatprep.subr.mxu0 0.0
    %1235 = vmatpush2.msra.mxu0 0.0
    %1236 = vmatprep.subr.mxu0 0.0
    %1237 = vmatpush2.msra.mxu0 0.0
    %1238 = vmatprep.subr.mxu0 0.0
    %1239 = vmatpush2.msra.mxu0 0.0
    %1240 = vmatprep.mubr.f32.mxu0 0.0
    %1241 = vmatmul.mubr.f32.gmra.mxu0 %v1100
    %v1242 = vpop.f32.mrf.mxu0
    %v1243 = vadd.f32 0.0, %v1242
    %v1244 = vpop.f32.mrf.mxu0
    %v1245 = vadd.f32 0.0, %v1244
    %1246 = vdwg.mxu0
    %v1247 = vadd.f32 %v1101, %v1172
    %v1248 = vadd.f32 %v1102, %v1174
    %v1249 = vadd.f32 %v1103, %v1243
    %v1250 = vadd.f32 %v1104, %v1245
    %v1251 = vtanh.pop %v1247
    %v1252 = vtanh.pop %v1248
    %v1253 = vtanh.pop %v1249
    %v1254 = vtanh.pop %v1250
    %v1255 = vmul.f32 %v1251, 0.5
    %v1256 = vadd.f32 %v1255, 0.5
    %v1257 = vmul.f32 %v1252, 0.5
    %v1258 = vadd.f32 %v1257, 0.5
    %v1259 = vmul.f32 %v1254, 0.5
    %v1260 = vadd.f32 %v1259, 0.5
    %v1261 = vmul.f32 %v1258, %v1098
    %v1262 = vmul.f32 %v1256, %v1253
    %v1263 = vadd.f32 %v1261, %v1262
    %v1264 = vtanh.pop %v1263
    %v1265 = vmul.f32 %v1260, %v1264
    %v1266 = vld [vmem:[%s188] sm:$0xff]
    %v1267 = vld [vmem:[%s188 + $0x8] sm:$0xff]
    %v1268 = vld [vmem:[%s188 + $0x10] sm:$0xff]
    %v1269 = vld [vmem:[%s188 + $0x18] sm:$0xff]
    %1270 = vmatprep.subr.mxu0 %v277
    %1271 = vmatpush1.msra.mxu0 %v276
    %1272 = vmatprep.subr.mxu0 %v273
    %1273 = vmatpush1.msra.mxu0 %v272
    %1274 = vmatprep.subr.mxu0 %v269
    %1275 = vmatpush1.msra.mxu0 %v268
    %1276 = vmatprep.subr.mxu0 %v265
    %1277 = vmatpush1.msra.mxu0 %v264
    %1278 = vmatprep.subr.mxu0 %v261
    %1279 = vmatpush1.msra.mxu0 %v260
    %1280 = vmatprep.subr.mxu0 %v257
    %1281 = vmatpush1.msra.mxu0 %v256
    %1282 = vmatprep.subr.mxu0 %v253
    %1283 = vmatpush1.msra.mxu0 %v252
    %1284 = vmatprep.subr.mxu0 %v249
    %1285 = vmatpush1.msra.mxu0 %v248
    %1286 = vmatprep.subr.mxu0 %v245
    %1287 = vmatpush1.msra.mxu0 %v244
    %1288 = vmatprep.subr.mxu0 %v241
    %1289 = vmatpush1.msra.mxu0 %v240
    %1290 = vmatprep.subr.mxu0 %v237
    %1291 = vmatpush1.msra.mxu0 %v236
    %1292 = vmatprep.subr.mxu0 %v233
    %1293 = vmatpush1.msra.mxu0 %v232
    %1294 = vmatprep.subr.mxu0 %v229
    %1295 = vmatpush1.msra.mxu0 %v228
    %1296 = vmatprep.subr.mxu0 %v225
    %1297 = vmatpush1.msra.mxu0 %v224
    %1298 = vmatprep.subr.mxu0 %v221
    %1299 = vmatpush1.msra.mxu0 %v220
    %1300 = vmatprep.subr.mxu0 %v217
    %1301 = vmatpush1.msra.mxu0 %v216
    %1302 = vmatprep.subr.mxu0 0.0
    %1303 = vmatpush2.msra.mxu0 0.0
    %1304 = vmatprep.subr.mxu0 0.0
    %1305 = vmatpush2.msra.mxu0 0.0
    %1306 = vmatprep.subr.mxu0 0.0
    %1307 = vmatpush2.msra.mxu0 0.0
    %1308 = vmatprep.subr.mxu0 0.0
    %1309 = vmatpush2.msra.mxu0 0.0
    %1310 = vmatprep.subr.mxu0 0.0
    %1311 = vmatpush2.msra.mxu0 0.0
    %1312 = vmatprep.subr.mxu0 0.0
    %1313 = vmatpush2.msra.mxu0 0.0
    %1314 = vmatprep.subr.mxu0 0.0
    %1315 = vmatpush2.msra.mxu0 0.0
    %1316 = vmatprep.subr.mxu0 0.0
    %1317 = vmatpush2.msra.mxu0 0.0
    %1318 = vmatprep.subr.mxu0 0.0
    %1319 = vmatpush2.msra.mxu0 0.0
    %1320 = vmatprep.subr.mxu0 0.0
    %1321 = vmatpush2.msra.mxu0 0.0
    %1322 = vmatprep.subr.mxu0 0.0
    %1323 = vmatpush2.msra.mxu0 0.0
    %1324 = vmatprep.subr.mxu0 0.0
    %1325 = vmatpush2.msra.mxu0 0.0
    %1326 = vmatprep.subr.mxu0 0.0
    %1327 = vmatpush2.msra.mxu0 0.0
    %1328 = vmatprep.subr.mxu0 0.0
    %1329 = vmatpush2.msra.mxu0 0.0
    %1330 = vmatprep.subr.mxu0 0.0
    %1331 = vmatpush2.msra.mxu0 0.0
    %1332 = vmatprep.subr.mxu0 0.0
    %1333 = vmatpush2.msra.mxu0 0.0
    %1334 = vmatprep.mubr.f32.mxu0 0.0
    %1335 = vmatmul.mubr.f32.gmra.mxu0 %v1265
    %v1336 = vpop.f32.mrf.mxu0
    %v1337 = vadd.f32 0.0, %v1336
    %v1338 = vpop.f32.mrf.mxu0
    %v1339 = vadd.f32 0.0, %v1338
    %1340 = vdwg.mxu0
    %1341 = vmatprep.subr.mxu0 %v279
    %1342 = vmatpush1.msra.mxu0 %v278
    %1343 = vmatprep.subr.mxu0 %v275
    %1344 = vmatpush1.msra.mxu0 %v274
    %1345 = vmatprep.subr.mxu0 %v271
    %1346 = vmatpush1.msra.mxu0 %v270
    %1347 = vmatprep.subr.mxu0 %v267
    %1348 = vmatpush1.msra.mxu0 %v266
    %1349 = vmatprep.subr.mxu0 %v263
    %1350 = vmatpush1.msra.mxu0 %v262
    %1351 = vmatprep.subr.mxu0 %v259
    %1352 = vmatpush1.msra.mxu0 %v258
    %1353 = vmatprep.subr.mxu0 %v255
    %1354 = vmatpush1.msra.mxu0 %v254
    %1355 = vmatprep.subr.mxu0 %v251
    %1356 = vmatpush1.msra.mxu0 %v250
    %1357 = vmatprep.subr.mxu0 %v247
    %1358 = vmatpush1.msra.mxu0 %v246
    %1359 = vmatprep.subr.mxu0 %v243
    %1360 = vmatpush1.msra.mxu0 %v242
    %1361 = vmatprep.subr.mxu0 %v239
    %1362 = vmatpush1.msra.mxu0 %v238
    %1363 = vmatprep.subr.mxu0 %v235
    %1364 = vmatpush1.msra.mxu0 %v234
    %1365 = vmatprep.subr.mxu0 %v231
    %1366 = vmatpush1.msra.mxu0 %v230
    %1367 = vmatprep.subr.mxu0 %v227
    %1368 = vmatpush1.msra.mxu0 %v226
    %1369 = vmatprep.subr.mxu0 %v223
    %1370 = vmatpush1.msra.mxu0 %v222
    %1371 = vmatprep.subr.mxu0 %v219
    %1372 = vmatpush1.msra.mxu0 %v218
    %1373 = vmatprep.subr.mxu0 0.0
    %1374 = vmatpush2.msra.mxu0 0.0
    %1375 = vmatprep.subr.mxu0 0.0
    %1376 = vmatpush2.msra.mxu0 0.0
    %1377 = vmatprep.subr.mxu0 0.0
    %1378 = vmatpush2.msra.mxu0 0.0
    %1379 = vmatprep.subr.mxu0 0.0
    %1380 = vmatpush2.msra.mxu0 0.0
    %1381 = vmatprep.subr.mxu0 0.0
    %1382 = vmatpush2.msra.mxu0 0.0
    %1383 = vmatprep.subr.mxu0 0.0
    %1384 = vmatpush2.msra.mxu0 0.0
    %1385 = vmatprep.subr.mxu0 0.0
    %1386 = vmatpush2.msra.mxu0 0.0
    %1387 = vmatprep.subr.mxu0 0.0
    %1388 = vmatpush2.msra.mxu0 0.0
    %1389 = vmatprep.subr.mxu0 0.0
    %1390 = vmatpush2.msra.mxu0 0.0
    %1391 = vmatprep.subr.mxu0 0.0
    %1392 = vmatpush2.msra.mxu0 0.0
    %1393 = vmatprep.subr.mxu0 0.0
    %1394 = vmatpush2.msra.mxu0 0.0
    %1395 = vmatprep.subr.mxu0 0.0
    %1396 = vmatpush2.msra.mxu0 0.0
    %1397 = vmatprep.subr.mxu0 0.0
    %1398 = vmatpush2.msra.mxu0 0.0
    %1399 = vmatprep.subr.mxu0 0.0
    %1400 = vmatpush2.msra.mxu0 0.0
    %1401 = vmatprep.subr.mxu0 0.0
    %1402 = vmatpush2.msra.mxu0 0.0
    %1403 = vmatprep.subr.mxu0 0.0
    %1404 = vmatpush2.msra.mxu0 0.0
    %1405 = vmatprep.mubr.f32.mxu0 0.0
    %1406 = vmatmul.mubr.f32.gmra.mxu0 %v1265
    %v1407 = vpop.f32.mrf.mxu0
    %v1408 = vadd.f32 0.0, %v1407
    %v1409 = vpop.f32.mrf.mxu0
    %v1410 = vadd.f32 0.0, %v1409
    %1411 = vdwg.mxu0
    %v1412 = vadd.f32 %v1266, %v1337
    %v1413 = vadd.f32 %v1267, %v1339
    %v1414 = vadd.f32 %v1268, %v1408
    %v1415 = vadd.f32 %v1269, %v1410
    %v1416 = vtanh.pop %v1412
    %v1417 = vtanh.pop %v1413
    %v1418 = vtanh.pop %v1414
    %v1419 = vtanh.pop %v1415
    %v1420 = vmul.f32 %v1416, 0.5
    %v1421 = vadd.f32 %v1420, 0.5
    %v1422 = vmul.f32 %v1417, 0.5
    %v1423 = vadd.f32 %v1422, 0.5
    %v1424 = vmul.f32 %v1419, 0.5
    %v1425 = vadd.f32 %v1424, 0.5
    %v1426 = vmul.f32 %v1423, %v1263
    %v1427 = vmul.f32 %v1421, %v1418
    %v1428 = vadd.f32 %v1426, %v1427
    %v1429 = vtanh.pop %v1428
    %v1430 = vmul.f32 %v1425, %v1429
    %v1431 = vld [vmem:[%s202] sm:$0xff]
    %v1432 = vld [vmem:[%s202 + $0x8] sm:$0xff]
    %v1433 = vld [vmem:[%s202 + $0x10] sm:$0xff]
    %v1434 = vld [vmem:[%s202 + $0x18] sm:$0xff]
    %1435 = vmatprep.subr.mxu0 %v277
    %1436 = vmatpush1.msra.mxu0 %v276
    %1437 = vmatprep.subr.mxu0 %v273
    %1438 = vmatpush1.msra.mxu0 %v272
    %1439 = vmatprep.subr.mxu0 %v269
    %1440 = vmatpush1.msra.mxu0 %v268
    %1441 = vmatprep.subr.mxu0 %v265
    %1442 = vmatpush1.msra.mxu0 %v264
    %1443 = vmatprep.subr.mxu0 %v261
    %1444 = vmatpush1.msra.mxu0 %v260
    %1445 = vmatprep.subr.mxu0 %v257
    %1446 = vmatpush1.msra.mxu0 %v256
    %1447 = vmatprep.subr.mxu0 %v253
    %1448 = vmatpush1.msra.mxu0 %v252
    %1449 = vmatprep.subr.mxu0 %v249
    %1450 = vmatpush1.msra.mxu0 %v248
    %1451 = vmatprep.subr.mxu0 %v245
    %1452 = vmatpush1.msra.mxu0 %v244
    %1453 = vmatprep.subr.mxu0 %v241
    %1454 = vmatpush1.msra.mxu0 %v240
    %1455 = vmatprep.subr.mxu0 %v237
    %1456 = vmatpush1.msra.mxu0 %v236
    %1457 = vmatprep.subr.mxu0 %v233
    %1458 = vmatpush1.msra.mxu0 %v232
    %1459 = vmatprep.subr.mxu0 %v229
    %1460 = vmatpush1.msra.mxu0 %v228
    %1461 = vmatprep.subr.mxu0 %v225
    %1462 = vmatpush1.msra.mxu0 %v224
    %1463 = vmatprep.subr.mxu0 %v221
    %1464 = vmatpush1.msra.mxu0 %v220
    %1465 = vmatprep.subr.mxu0 %v217
    %1466 = vmatpush1.msra.mxu0 %v216
    %1467 = vmatprep.subr.mxu0 0.0
    %1468 = vmatpush2.msra.mxu0 0.0
    %1469 = vmatprep.subr.mxu0 0.0
    %1470 = vmatpush2.msra.mxu0 0.0
    %1471 = vmatprep.subr.mxu0 0.0
    %1472 = vmatpush2.msra.mxu0 0.0
    %1473 = vmatprep.subr.mxu0 0.0
    %1474 = vmatpush2.msra.mxu0 0.0
    %1475 = vmatprep.subr.mxu0 0.0
    %1476 = vmatpush2.msra.mxu0 0.0
    %1477 = vmatprep.subr.mxu0 0.0
    %1478 = vmatpush2.msra.mxu0 0.0
    %1479 = vmatprep.subr.mxu0 0.0
    %1480 = vmatpush2.msra.mxu0 0.0
    %1481 = vmatprep.subr.mxu0 0.0
    %1482 = vmatpush2.msra.mxu0 0.0
    %1483 = vmatprep.subr.mxu0 0.0
    %1484 = vmatpush2.msra.mxu0 0.0
    %1485 = vmatprep.subr.mxu0 0.0
    %1486 = vmatpush2.msra.mxu0 0.0
    %1487 = vmatprep.subr.mxu0 0.0
    %1488 = vmatpush2.msra.mxu0 0.0
    %1489 = vmatprep.subr.mxu0 0.0
    %1490 = vmatpush2.msra.mxu0 0.0
    %1491 = vmatprep.subr.mxu0 0.0
    %1492 = vmatpush2.msra.mxu0 0.0
    %1493 = vmatprep.subr.mxu0 0.0
    %1494 = vmatpush2.msra.mxu0 0.0
    %1495 = vmatprep.subr.mxu0 0.0
    %1496 = vmatpush2.msra.mxu0 0.0
    %1497 = vmatprep.subr.mxu0 0.0
    %1498 = vmatpush2.msra.mxu0 0.0
    %1499 = vmatprep.mubr.f32.mxu0 0.0
    %1500 = vmatmul.mubr.f32.gmra.mxu0 %v1430
    %v1501 = vpop.f32.mrf.mxu0
    %v1502 = vadd.f32 0.0, %v1501
    %v1503 = vpop.f32.mrf.mxu0
    %v1504 = vadd.f32 0.0, %v1503
    %1505 = vdwg.mxu0
    %1506 = vmatprep.subr.mxu0 %v279
    %1507 = vmatpush1.msra.mxu0 %v278
    %1508 = vmatprep.subr.mxu0 %v275
    %1509 = vmatpush1.msra.mxu0 %v274
    %1510 = vmatprep.subr.mxu0 %v271
    %1511 = vmatpush1.msra.mxu0 %v270
    %1512 = vmatprep.subr.mxu0 %v267
    %1513 = vmatpush1.msra.mxu0 %v266
    %1514 = vmatprep.subr.mxu0 %v263
    %1515 = vmatpush1.msra.mxu0 %v262
    %1516 = vmatprep.subr.mxu0 %v259
    %1517 = vmatpush1.msra.mxu0 %v258
    %1518 = vmatprep.subr.mxu0 %v255
    %1519 = vmatpush1.msra.mxu0 %v254
    %1520 = vmatprep.subr.mxu0 %v251
    %1521 = vmatpush1.msra.mxu0 %v250
    %1522 = vmatprep.subr.mxu0 %v247
    %1523 = vmatpush1.msra.mxu0 %v246
    %1524 = vmatprep.subr.mxu0 %v243
    %1525 = vmatpush1.msra.mxu0 %v242
    %1526 = vmatprep.subr.mxu0 %v239
    %1527 = vmatpush1.msra.mxu0 %v238
    %1528 = vmatprep.subr.mxu0 %v235
    %1529 = vmatpush1.msra.mxu0 %v234
    %1530 = vmatprep.subr.mxu0 %v231
    %1531 = vmatpush1.msra.mxu0 %v230
    %1532 = vmatprep.subr.mxu0 %v227
    %1533 = vmatpush1.msra.mxu0 %v226
    %1534 = vmatprep.subr.mxu0 %v223
    %1535 = vmatpush1.msra.mxu0 %v222
    %1536 = vmatprep.subr.mxu0 %v219
    %1537 = vmatpush1.msra.mxu0 %v218
    %1538 = vmatprep.subr.mxu0 0.0
    %1539 = vmatpush2.msra.mxu0 0.0
    %1540 = vmatprep.subr.mxu0 0.0
    %1541 = vmatpush2.msra.mxu0 0.0
    %1542 = vmatprep.subr.mxu0 0.0
    %1543 = vmatpush2.msra.mxu0 0.0
    %1544 = vmatprep.subr.mxu0 0.0
    %1545 = vmatpush2.msra.mxu0 0.0
    %1546 = vmatprep.subr.mxu0 0.0
    %1547 = vmatpush2.msra.mxu0 0.0
    %1548 = vmatprep.subr.mxu0 0.0
    %1549 = vmatpush2.msra.mxu0 0.0
    %1550 = vmatprep.subr.mxu0 0.0
    %1551 = vmatpush2.msra.mxu0 0.0
    %1552 = vmatprep.subr.mxu0 0.0
    %1553 = vmatpush2.msra.mxu0 0.0
    %1554 = vmatprep.subr.mxu0 0.0
    %1555 = vmatpush2.msra.mxu0 0.0
    %1556 = vmatprep.subr.mxu0 0.0
    %1557 = vmatpush2.msra.mxu0 0.0
    %1558 = vmatprep.subr.mxu0 0.0
    %1559 = vmatpush2.msra.mxu0 0.0
    %1560 = vmatprep.subr.mxu0 0.0
    %1561 = vmatpush2.msra.mxu0 0.0
    %1562 = vmatprep.subr.mxu0 0.0
    %1563 = vmatpush2.msra.mxu0 0.0
    %1564 = vmatprep.subr.mxu0 0.0
    %1565 = vmatpush2.msra.mxu0 0.0
    %1566 = vmatprep.subr.mxu0 0.0
    %1567 = vmatpush2.msra.mxu0 0.0
    %1568 = vmatprep.subr.mxu0 0.0
    %1569 = vmatpush2.msra.mxu0 0.0
    %1570 = vmatprep.mubr.f32.mxu0 0.0
    %1571 = vmatmul.mubr.f32.gmra.mxu0 %v1430
    %v1572 = vpop.f32.mrf.mxu0
    %v1573 = vadd.f32 0.0, %v1572
    %v1574 = vpop.f32.mrf.mxu0
    %v1575 = vadd.f32 0.0, %v1574
    %1576 = vdwg.mxu0
    %v1577 = vadd.f32 %v1431, %v1502
    %v1578 = vadd.f32 %v1432, %v1504
    %v1579 = vadd.f32 %v1433, %v1573
    %v1580 = vadd.f32 %v1434, %v1575
    %v1581 = vtanh.pop %v1577
    %v1582 = vtanh.pop %v1578
    %v1583 = vtanh.pop %v1579
    %v1584 = vtanh.pop %v1580
    %v1585 = vmul.f32 %v1581, 0.5
    %v1586 = vadd.f32 %v1585, 0.5
    %v1587 = vmul.f32 %v1582, 0.5
    %v1588 = vadd.f32 %v1587, 0.5
    %v1589 = vmul.f32 %v1584, 0.5
    %v1590 = vadd.f32 %v1589, 0.5
    %v1591 = vmul.f32 %v1588, %v1428
    %v1592 = vmul.f32 %v1586, %v1583
    %v1593 = vadd.f32 %v1591, %v1592
    %v1594 = vtanh.pop %v1593
    %v1595 = vmul.f32 %v1590, %v1594
    %v1596 = vld [vmem:[#allocation9] sm:$0xff]
    %v1597 = vld [vmem:[#allocation9 + $0x8] sm:$0xff]
    %v1598 = vld [vmem:[#allocation9 + $0x10] sm:$0xff]
    %v1599 = vld [vmem:[#allocation9 + $0x18] sm:$0xff]
    %v1600 = vld [vmem:[#allocation9 + $0x20] sm:$0xff]
    %v1601 = vld [vmem:[#allocation9 + $0x28] sm:$0xff]
    %v1602 = vld [vmem:[#allocation9 + $0x30] sm:$0xff]
    %v1603 = vld [vmem:[#allocation9 + $0x38] sm:$0xff]
    %v1604 = vld [vmem:[#allocation9 + $0x40] sm:$0xff]
    %v1605 = vld [vmem:[#allocation9 + $0x48] sm:$0xff]
    %v1606 = vld [vmem:[#allocation9 + $0x50] sm:$0xff]
    %v1607 = vld [vmem:[#allocation9 + $0x58] sm:$0xff]
    %v1608 = vld [vmem:[#allocation9 + $0x60] sm:$0xff]
    %v1609 = vld [vmem:[#allocation9 + $0x68] sm:$0xff]
    %v1610 = vld [vmem:[#allocation9 + $0x70] sm:$0xff]
    %v1611 = vld [vmem:[#allocation9 + $0x78] sm:$0xff]
    %v1612 = vld [vmem:[%s4] sm:$0x1]
    %v1614 = vlaneseq
    %v1615 = vshrl.u32 %v1614, 7
    %v1616 = vsub.s32 0, %v1615
    %v1617 = vrot.slane %v1612, %v1616
    %1619 = vmatprep.subr.mxu0 0.0
    %1620 = vmatpush1.msra.mxu0 %v1611
    %1621 = vmatprep.subr.mxu0 0.0
    %1622 = vmatpush1.msra.mxu0 %v1610
    %1623 = vmatprep.subr.mxu0 0.0
    %1624 = vmatpush1.msra.mxu0 %v1609
    %1625 = vmatprep.subr.mxu0 0.0
    %1626 = vmatpush1.msra.mxu0 %v1608
    %1627 = vmatprep.subr.mxu0 0.0
    %1628 = vmatpush1.msra.mxu0 %v1607
    %1629 = vmatprep.subr.mxu0 0.0
    %1630 = vmatpush1.msra.mxu0 %v1606
    %1631 = vmatprep.subr.mxu0 0.0
    %1632 = vmatpush1.msra.mxu0 %v1605
    %1633 = vmatprep.subr.mxu0 0.0
    %1634 = vmatpush1.msra.mxu0 %v1604
    %1635 = vmatprep.subr.mxu0 0.0
    %1636 = vmatpush1.msra.mxu0 %v1603
    %1637 = vmatprep.subr.mxu0 0.0
    %1638 = vmatpush1.msra.mxu0 %v1602
    %1639 = vmatprep.subr.mxu0 0.0
    %1640 = vmatpush1.msra.mxu0 %v1601
    %1641 = vmatprep.subr.mxu0 0.0
    %1642 = vmatpush1.msra.mxu0 %v1600
    %1643 = vmatprep.subr.mxu0 0.0
    %1644 = vmatpush1.msra.mxu0 %v1599
    %1645 = vmatprep.subr.mxu0 0.0
    %1646 = vmatpush1.msra.mxu0 %v1598
    %1647 = vmatprep.subr.mxu0 0.0
    %1648 = vmatpush1.msra.mxu0 %v1597
    %1649 = vmatprep.subr.mxu0 0.0
    %1650 = vmatpush1.msra.mxu0 %v1596
    %1651 = vmatprep.subr.mxu0 0.0
    %1652 = vmatpush2.msra.mxu0 0.0
    %1653 = vmatprep.subr.mxu0 0.0
    %1654 = vmatpush2.msra.mxu0 0.0
    %1655 = vmatprep.subr.mxu0 0.0
    %1656 = vmatpush2.msra.mxu0 0.0
    %1657 = vmatprep.subr.mxu0 0.0
    %1658 = vmatpush2.msra.mxu0 0.0
    %1659 = vmatprep.subr.mxu0 0.0
    %1660 = vmatpush2.msra.mxu0 0.0
    %1661 = vmatprep.subr.mxu0 0.0
    %1662 = vmatpush2.msra.mxu0 0.0
    %1663 = vmatprep.subr.mxu0 0.0
    %1664 = vmatpush2.msra.mxu0 0.0
    %1665 = vmatprep.subr.mxu0 0.0
    %1666 = vmatpush2.msra.mxu0 0.0
    %1667 = vmatprep.subr.mxu0 0.0
    %1668 = vmatpush2.msra.mxu0 0.0
    %1669 = vmatprep.subr.mxu0 0.0
    %1670 = vmatpush2.msra.mxu0 0.0
    %1671 = vmatprep.subr.mxu0 0.0
    %1672 = vmatpush2.msra.mxu0 0.0
    %1673 = vmatprep.subr.mxu0 0.0
    %1674 = vmatpush2.msra.mxu0 0.0
    %1675 = vmatprep.subr.mxu0 0.0
    %1676 = vmatpush2.msra.mxu0 0.0
    %1677 = vmatprep.subr.mxu0 0.0
    %1678 = vmatpush2.msra.mxu0 0.0
    %1679 = vmatprep.subr.mxu0 0.0
    %1680 = vmatpush2.msra.mxu0 0.0
    %1681 = vmatprep.subr.mxu0 0.0
    %1682 = vmatpush2.msra.mxu0 0.0
    %1683 = vmatprep.mubr.f32.mxu0 0.0
    %1684 = vmatmul.mubr.f32.gmra.mxu0 %v1595
    %v1685 = vpop.f32.mrf.mxu0
    %v1686 = vadd.f32 %v1617, %v1685
    %v1687 = vpop.f32.mrf.mxu0
    %1688 = vdwg.mxu0
    %1689 = vst [vmem:[%s5] sm:$0xff] %v1686
    // Predicated region
    $region30: #{text_lstm_forward.1} parent=1 // pred_check
      _
    $region31: #{text_lstm_forward.1} parent=1 // pred_check_branch
      %1691 = sbr.rel (0) target = $region33
    $region32: #{text_lstm_forward.1} parent=1 // pred_region
      _
    $region33: #{text_lstm_forward.1} parent=1 // pred_fallthru
      _
    // Predicated region
    $region34: #{text_lstm_forward.1} parent=1 // pred_check
      _
    $region35: #{text_lstm_forward.1} parent=1 // pred_check_branch
      %1693 = sbr.rel (0) target = $region37
    $region36: #{text_lstm_forward.1} parent=1 // pred_region
      _
    $region37: #{text_lstm_forward.1} parent=1 // pred_fallthru
      _
    %1694 = vsyncpa [#allocation6], 1
    %1695 = vsyncpa [#allocation8], 1

</llo_original>
